<compile_context>
chip_gen: v7x
topology: tpu7x:2x2x1
jax: 0.10.0
libtpu: 0.0.40
codegen_flags: <defaults>
</compile_context>

<pallas_src>
import functools

import jax
import jax.numpy as jnp
import numpy as np
from jax.experimental import pallas as pl
from jax.experimental.pallas import tpu as pltpu


def _round_up(x, m):
    return ((x + m - 1) // m) * m


# ----------------------------------------------------------------------------
# Pallas kernel
# ----------------------------------------------------------------------------
def _adapter_kernel(cam_ref, feat_ref, out_ref, *,
                    scale_min, scale_max, d_sh, sh_degree, sh_deg_scale,
                    inv_w, inv_h, eps):
    # cam_ref : (1, 1, 25)          per-view [ext 4x4 row-major | intr 3x3 row-major]
    # feat_ref: (1, F_in, 1, 8, L)  rows: 0=x 1=y 2=depth 3:6=raw scale 6:10=raw quat 10:=raw sh
    # out_ref : (1, F_out, 1, 8, L) rows: 0:3 means | 3:12 cov | 12:15 scales | 15:19 rot | 19: sh

    def E(i, j):                      # extrinsics element (scalar)
        return cam_ref[0, 0, 4 * i + j]

    def K(i, j):                      # intrinsics element (scalar)
        return cam_ref[0, 0, 16 + 3 * i + j]

    x = feat_ref[0, 0, 0]             # (8, L)
    y = feat_ref[0, 1, 0]
    depth = feat_ref[0, 2, 0]

    # ---- scales: sigmoid squash to [scale_min, scale_max] ----
    s_raw = feat_ref[0, 3:6, 0]                                       # (3, 8, L)
    scales = scale_min + (scale_max - scale_min) * jax.nn.sigmoid(s_raw)

    # ---- per-view scale multiplier: 0.1 * sum(inv(K[:2,:2]) @ [1/w, 1/h]) (scalar) ----
    a, b = K(0, 0), K(0, 1)
    c, d = K(1, 0), K(1, 1)
    mult = 0.1 * (d * inv_w - b * inv_h - c * inv_w + a * inv_h) / (a * d - b * c)

    scales = scales * (depth * mult)                                  # (3, 8, L)
    out_ref[0, 12:15, 0] = scales

    # ---- quaternion normalisation (xyzw order) ----
    q0 = feat_ref[0, 6, 0]
    q1 = feat_ref[0, 7, 0]
    q2 = feat_ref[0, 8, 0]
    q3 = feat_ref[0, 9, 0]
    qq = q0 * q0 + q1 * q1 + q2 * q2 + q3 * q3
    inv_qn = 1.0 / (jnp.sqrt(qq) + eps)
    qi, qj, qk, qr = q0 * inv_qn, q1 * inv_qn, q2 * inv_qn, q3 * inv_qn
    out_ref[0, 15, 0] = qi
    out_ref[0, 16, 0] = qj
    out_ref[0, 17, 0] = qk
    out_ref[0, 18, 0] = qr

    # ---- quaternion -> rotation matrix ----
    two_s = 2.0 / (qi * qi + qj * qj + qk * qk + qr * qr + 1e-8)
    r00 = 1.0 - two_s * (qj * qj + qk * qk)
    r01 = two_s * (qi * qj - qk * qr)
    r02 = two_s * (qi * qk + qj * qr)
    r10 = two_s * (qi * qj + qk * qr)
    r11 = 1.0 - two_s * (qi * qi + qk * qk)
    r12 = two_s * (qj * qk - qi * qr)
    r20 = two_s * (qi * qk - qj * qr)
    r21 = two_s * (qj * qk + qi * qr)
    r22 = 1.0 - two_s * (qi * qi + qj * qj)
    R = [[r00, r01, r02], [r10, r11, r12], [r20, r21, r22]]

    # ---- local covariance R diag(s^2) R^T : symmetric, 6 unique entries ----
    s2 = scales * scales
    s2k = [s2[0], s2[1], s2[2]]
    Rs = [[R[m][k2] * s2k[k2] for k2 in range(3)] for m in range(3)]
    covL = [[None] * 3 for _ in range(3)]
    for m in range(3):
        for n in range(m, 3):
            v = Rs[m][0] * R[n][0] + Rs[m][1] * R[n][1] + Rs[m][2] * R[n][2]
            covL[m][n] = v
            covL[n][m] = v

    # ---- world covariance C covL C^T with C = extrinsics[:3,:3] (scalars) ----
    C = [[E(i, j) for j in range(3)] for i in range(3)]
    t = [[covL[p][0] * C[n][0] + covL[p][1] * C[n][1] + covL[p][2] * C[n][2]
          for p in range(3)] for n in range(3)]
    covW = [[None] * 3 for _ in range(3)]
    for m in range(3):
        for n in range(m, 3):
            v = C[m][0] * t[n][0] + C[m][1] * t[n][1] + C[m][2] * t[n][2]
            covW[m][n] = v
            covW[n][m] = v
    for m in range(3):
        for n in range(3):
            out_ref[0, 3 + 3 * m + n, 0] = covW[m][n]

    # ---- world rays: dirs = normalize(K^-1 [x,y,1]); rotate to world ----
    k00, k01, k02 = K(0, 0), K(0, 1), K(0, 2)
    k10, k11, k12 = K(1, 0), K(1, 1), K(1, 2)
    k20, k21, k22 = K(2, 0), K(2, 1), K(2, 2)
    detK = (k00 * (k11 * k22 - k12 * k21)
            - k01 * (k10 * k22 - k12 * k20)
            + k02 * (k10 * k21 - k11 * k20))
    inv_det = 1.0 / detK
    i00 = (k11 * k22 - k12 * k21) * inv_det
    i01 = (k02 * k21 - k01 * k22) * inv_det
    i02 = (k01 * k12 - k02 * k11) * inv_det
    i10 = (k12 * k20 - k10 * k22) * inv_det
    i11 = (k00 * k22 - k02 * k20) * inv_det
    i12 = (k02 * k10 - k00 * k12) * inv_det
    i20 = (k10 * k21 - k11 * k20) * inv_det
    i21 = (k01 * k20 - k00 * k21) * inv_det
    i22 = (k00 * k11 - k01 * k10) * inv_det

    dcx = i00 * x + i01 * y + i02
    dcy = i10 * x + i11 * y + i12
    dcz = i20 * x + i21 * y + i22
    inv_dn = jax.lax.rsqrt(dcx * dcx + dcy * dcy + dcz * dcz)      # EUP
    nx, ny, nz = dcx * inv_dn, dcy * inv_dn, dcz * inv_dn

    dwx = C[0][0] * nx + C[0][1] * ny + C[0][2] * nz
    dwy = C[1][0] * nx + C[1][1] * ny + C[1][2] * nz
    dwz = C[2][0] * nx + C[2][1] * ny + C[2][2] * nz

    out_ref[0, 0, 0] = E(0, 3) + dwx * depth
    out_ref[0, 1, 0] = E(1, 3) + dwy * depth
    out_ref[0, 2, 0] = E(2, 3) + dwz * depth

    # ---- spherical harmonics: copy + static per-degree mask ----
    for c_idx in range(3):
        for deg in range(sh_degree + 1):
            lo, hi = deg * deg, (deg + 1) * (deg + 1)
            src = feat_ref[0, 10 + c_idx * d_sh + lo: 10 + c_idx * d_sh + hi, 0]
            out_ref[0, 19 + c_idx * d_sh + lo: 19 + c_idx * d_sh + hi, 0] = (
                src * sh_deg_scale[deg])


# ----------------------------------------------------------------------------
# Wrapper
# ----------------------------------------------------------------------------
def _build_sh_mask(sh_degree):
    d_sh = (sh_degree + 1) ** 2
    mask = np.ones((d_sh,), np.float32)
    for degree in range(1, sh_degree + 1):
        mask[degree ** 2:(degree + 1) ** 2] = 0.1 * 0.25 ** degree
    return mask


def gaussian_adapter_pallas(extrinsics, intrinsics, coordinates, depths, opacities,
                            raw_gaussians, image_shape,
                            scale_min, scale_max, sh_degree,
                            eps=1e-8, tile_n=2048):
    d_sh = (sh_degree + 1) ** 2
    d_in = 7 + 3 * d_sh
    assert raw_gaussians.shape[-1] == d_in
    f32 = jnp.float32

    batch = jnp.broadcast_shapes(extrinsics.shape[:-2], intrinsics.shape[:-2],
                                 coordinates.shape[:-1], depths.shape,
                                 opacities.shape, raw_gaussians.shape[:-1])
    nb = len(batch)
    N = int(np.prod(batch)) if nb else 1

    # --- camera dedup: cameras are constant over the trailing point dims ---
    cam_batch = jnp.broadcast_shapes(extrinsics.shape[:-2], intrinsics.shape[:-2])
    cb = (1,) * (nb - len(cam_batch)) + tuple(cam_batch)
    split = 0
    for i, dsz in enumerate(cb):
        if dsz != 1:
            split = i + 1
    V = int(np.prod(batch[:split])) if split else 1
    P = N // V

    cam_target = tuple(batch[:split]) + (1,) * (nb - split)
    ext_b = jnp.broadcast_to(extrinsics, cam_target + (4, 4)).reshape(V, 16)
    intr_b = jnp.broadcast_to(intrinsics, cam_target + (3, 3)).reshape(V, 9)
    cam = jnp.concatenate([ext_b, intr_b], axis=-1).reshape(V, 1, 25).astype(f32)

    # --- per-point features merged into one feature-major slab ---
    coord_b = jnp.broadcast_to(coordinates, batch + (2,)).reshape(V, P, 2)
    depth_b = jnp.broadcast_to(depths, batch).reshape(V, P, 1)
    raw_b = jnp.broadcast_to(raw_gaussians, batch + (d_in,)).reshape(V, P, d_in)
    feat = jnp.concatenate([coord_b, depth_b, raw_b], axis=-1).astype(f32)   # (V, P, F_in)
    f_in = 3 + d_in
    f_out = 19 + 3 * d_sh

    # --- tiling: tile points as (8 sublanes x L lanes) full-vreg tiles ---
    tile = max(1024, (int(tile_n) // 1024) * 1024)
    tile = min(tile, _round_up(max(P, 1), 1024))
    p_pad = _round_up(max(P, 1), tile)
    if p_pad != P:
        feat = jnp.pad(feat, ((0, 0), (0, p_pad - P), (0, 0)))
    nblk = p_pad // tile
    lane = tile // 8
    feat = feat.transpose(0, 2, 1).reshape(V, f_in, nblk, 8, lane)

    h, w = image_shape
    sh_deg_scale = tuple(1.0 if deg == 0 else 0.1 * 0.25 ** deg
                         for deg in range(sh_degree + 1))
    kernel = functools.partial(
        _adapter_kernel,
        scale_min=float(scale_min), scale_max=float(scale_max),
        d_sh=d_sh, sh_degree=int(sh_degree), sh_deg_scale=sh_deg_scale,
        inv_w=1.0 / float(w), inv_h=1.0 / float(h), eps=float(eps))

    out = pl.pallas_call(
        kernel,
        out_shape=jax.ShapeDtypeStruct((V, f_out, nblk, 8, lane), f32),
        grid_spec=pltpu.PrefetchScalarGridSpec(
            num_scalar_prefetch=0,
            grid=(V, nblk),
            in_specs=[
                pl.BlockSpec((1, 1, 25), lambda v, t: (v, 0, 0)),
                pl.BlockSpec((1, f_in, 1, 8, lane), lambda v, t: (v, 0, t, 0, 0)),
            ],
            out_specs=pl.BlockSpec((1, f_out, 1, 8, lane),
                                   lambda v, t: (v, 0, t, 0, 0))),
        compiler_params=pltpu.CompilerParams(
            dimension_semantics=("parallel", "parallel")),
    )(cam, feat)

    # one transpose pass on the single fused output slab
    out = out.reshape(V, f_out, p_pad).transpose(0, 2, 1)[:, :P, :]
    out = out.reshape(*batch, f_out)

    means = out[..., 0:3]
    covariances = out[..., 3:12].reshape(*batch, 3, 3)
    scales_o = out[..., 12:15]
    rotations = out[..., 15:19]
    harmonics = out[..., 19:].reshape(*batch, 3, d_sh)
    opac = jnp.broadcast_to(opacities, batch)
    return dict(means=means, covariances=covariances, scales=scales_o,
                rotations=rotations, harmonics=harmonics, opacities=opac)


# ----------------------------------------------------------------------------
# Pure-JAX reference (mirrors the PyTorch module), used only for verification
# ----------------------------------------------------------------------------
def _quaternion_to_matrix(q, eps=1e-8):
    i, j, k, r = q[..., 0], q[..., 1], q[..., 2], q[..., 3]
    two_s = 2.0 / (jnp.sum(q * q, axis=-1) + eps)
    o = jnp.stack([
        1 - two_s * (j * j + k * k), two_s * (i * j - k * r), two_s * (i * k + j * r),
        two_s * (i * j + k * r), 1 - two_s * (i * i + k * k), two_s * (j * k - i * r),
        two_s * (i * k - j * r), two_s * (j * k + i * r), 1 - two_s * (i * i + j * j),
    ], axis=-1)
    return o.reshape(*q.shape[:-1], 3, 3)


def _build_covariance(scale, rot_xyzw):
    S = scale[..., :, None] * jnp.eye(3, dtype=scale.dtype)
    R = _quaternion_to_matrix(rot_xyzw)
    return R @ S @ jnp.swapaxes(S, -1, -2) @ jnp.swapaxes(R, -1, -2)


def _get_world_rays(coordinates, extrinsics, intrinsics):
    coords_h = jnp.concatenate([coordinates, jnp.ones_like(coordinates[..., :1])], -1)
    dirs = jnp.einsum("...ij,...j->...i", jnp.linalg.inv(intrinsics), coords_h)
    dirs = dirs / jnp.linalg.norm(dirs, axis=-1, keepdims=True)
    dirs_h = jnp.concatenate([dirs, jnp.zeros_like(dirs[..., :1])], -1)
    dirs_w = jnp.einsum("...ij,...j->...i", extrinsics, dirs_h)[..., :3]
    origins = jnp.broadcast_to(extrinsics[..., :3, 3], dirs_w.shape)
    return origins, dirs_w


def gaussian_adapter_reference(extrinsics, intrinsics, coordinates, depths, opacities,
                               raw_gaussians, image_shape,
                               scale_min, scale_max, sh_degree, eps=1e-8):
    d_sh = (sh_degree + 1) ** 2
    scales, rotations, sh = jnp.split(raw_gaussians, [3, 7], axis=-1)
    scales = scale_min + (scale_max - scale_min) * jax.nn.sigmoid(scales)
    h, w = image_shape
    pixel_size = 1.0 / jnp.array([w, h], jnp.float32)
    xy_mult = 0.1 * jnp.einsum("...ij,j->...i",
                               jnp.linalg.inv(intrinsics[..., :2, :2]), pixel_size)
    multiplier = xy_mult.sum(-1)
    scales = scales * depths[..., None] * multiplier[..., None]
    rotations = rotations / (jnp.linalg.norm(rotations, axis=-1, keepdims=True) + eps)
    sh = sh.reshape(*sh.shape[:-1], 3, d_sh)
    sh = jnp.broadcast_to(sh, (*opacities.shape, 3, d_sh)) * _build_sh_mask(sh_degree)
    cov = _build_covariance(scales, rotations)
    c2w = extrinsics[..., :3, :3]
    cov = c2w @ cov @ jnp.swapaxes(c2w, -1, -2)
    origins, dirs = _get_world_rays(coordinates, extrinsics, intrinsics)
    means = origins + dirs * depths[..., None]
    return dict(means=means, covariances=cov, scales=scales,
                rotations=jnp.broadcast_to(rotations, (*scales.shape[:-1], 4)),
                harmonics=sh, opacities=opacities)


# ----------------------------------------------------------------------------
# Demo
# ----------------------------------------------------------------------------
if __name__ == "__main__":
    key = jax.random.PRNGKey(0)
    B, Vv, HW = 2, 2, 1024          # 2 batches, 2 views, 32x32 pixels per view
    H_IMG, W_IMG = 32, 32
    SH_DEGREE = 1
    D_SH = (SH_DEGREE + 1) ** 2
    D_IN = 7 + 3 * D_SH
    SCALE_MIN, SCALE_MAX = 0.5, 15.0

    ks = jax.random.split(key, 6)

    # camera extrinsics (c2w): proper rotation from a random quaternion + translation
    q = jax.random.normal(ks[0], (B, Vv, 4), jnp.float32)
    q = q / jnp.linalg.norm(q, axis=-1, keepdims=True)
    Rcam = _quaternion_to_matrix(q)
    tcam = jax.random.normal(ks[1], (B, Vv, 3), jnp.float32)
    extr = jnp.zeros((B, Vv, 4, 4), jnp.float32)
    extr = extr.at[..., :3, :3].set(Rcam).at[..., :3, 3].set(tcam).at[..., 3, 3].set(1.0)
    extr = extr[:, :, None]                                   # (B, V, 1, 4, 4)

    # normalized intrinsics
    fx = 1.0 + 0.5 * jax.random.uniform(ks[2], (B, Vv), jnp.float32)
    fy = 1.0 + 0.5 * jax.random.uniform(ks[3], (B, Vv), jnp.float32)
    intr = jnp.zeros((B, Vv, 3, 3), jnp.float32)
    intr = (intr.at[..., 0, 0].set(fx).at[..., 1, 1].set(fy)
                .at[..., 0, 2].set(0.5).at[..., 1, 2].set(0.5).at[..., 2, 2].set(1.0))
    intr = intr[:, :, None]                                   # (B, V, 1, 3, 3)

    coords = jax.random.uniform(ks[4], (B, Vv, HW, 2), jnp.float32)       # pixel (x, y)
    depths = 0.5 + 1.5 * jax.random.uniform(ks[5], (B, Vv, HW), jnp.float32)
    opac = jax.random.uniform(jax.random.fold_in(key, 7), (B, Vv, HW), jnp.float32)
    raw_g = jax.random.normal(jax.random.fold_in(key, 8), (B, Vv, HW, D_IN), jnp.float32)

    out = gaussian_adapter_pallas(extr, intr, coords, depths, opac, raw_g,
                                  (H_IMG, W_IMG), SCALE_MIN, SCALE_MAX, SH_DEGREE)
    out = jax.tree_util.tree_map(jax.block_until_ready, out)

    ref = gaussian_adapter_reference(extr, intr, coords, depths, opac, raw_g,
                                     (H_IMG, W_IMG), SCALE_MIN, SCALE_MAX, SH_DEGREE)

    for name in ("means", "covariances", "scales", "rotations", "harmonics"):
        np.testing.assert_allclose(np.asarray(out[name]), np.asarray(ref[name]),
                                   rtol=3e-4, atol=3e-5, err_msg=name)
    np.testing.assert_allclose(np.asarray(out["opacities"]),
                               np.asarray(ref["opacities"]), rtol=1e-6, atol=1e-6)

    print("KERNEL_OK")
</pallas_src>

<mosaic_0001>
module attributes {stable_mosaic.version = 11 : i64} {
  func.func @_adapter_kernel(%arg0: i32, %arg1: i32, %arg2: memref<1x1x25xf32, #tpu.memory_space<vmem>>, %arg3: memref<1x22x1x8x128xf32, #tpu.memory_space<vmem>>, %arg4: memref<1x31x1x8x128xf32, #tpu.memory_space<vmem>>) attributes {dimension_semantics = [#tpu.dimension_semantics<parallel>, #tpu.dimension_semantics<parallel>], iteration_bounds = array<i64: 4, 1>, scalar_prefetch = 0 : i64, scratch_operands = 0 : i64, tpu.core_type = #tpu.core_type<tc>, window_params = [{transform_indices = @transform_0, window_bounds = array<i64: 1, 1, 25>}, {transform_indices = @transform_1, window_bounds = array<i64: 1, 22, 1, 8, 128>}, {transform_indices = @transform_2, window_bounds = array<i64: 1, 31, 1, 8, 128>}]} {
    %c0 = arith.constant 0 : index
    %c0_0 = arith.constant 0 : index
    %c0_1 = arith.constant 0 : index
    %c0_2 = arith.constant 0 : index
    %c0_3 = arith.constant 0 : index
    %0 = vector.load %arg3[%c0, %c0_0, %c0_1, %c0_2, %c0_3] : memref<1x22x1x8x128xf32, #tpu.memory_space<vmem>>, vector<1x1x1x8x128xf32>
    %1 = vector.shape_cast %0 : vector<1x1x1x8x128xf32> to vector<8x128xf32>
    %c0_4 = arith.constant 0 : index
    %c1 = arith.constant 1 : index
    %c0_5 = arith.constant 0 : index
    %c0_6 = arith.constant 0 : index
    %c0_7 = arith.constant 0 : index
    %2 = vector.load %arg3[%c0_4, %c1, %c0_5, %c0_6, %c0_7] : memref<1x22x1x8x128xf32, #tpu.memory_space<vmem>>, vector<1x1x1x8x128xf32>
    %3 = vector.shape_cast %2 : vector<1x1x1x8x128xf32> to vector<8x128xf32>
    %c0_8 = arith.constant 0 : index
    %c2 = arith.constant 2 : index
    %c0_9 = arith.constant 0 : index
    %c0_10 = arith.constant 0 : index
    %c0_11 = arith.constant 0 : index
    %4 = vector.load %arg3[%c0_8, %c2, %c0_9, %c0_10, %c0_11] : memref<1x22x1x8x128xf32, #tpu.memory_space<vmem>>, vector<1x1x1x8x128xf32>
    %5 = vector.shape_cast %4 : vector<1x1x1x8x128xf32> to vector<8x128xf32>
    %c0_12 = arith.constant 0 : index
    %c3 = arith.constant 3 : index
    %c0_13 = arith.constant 0 : index
    %c0_14 = arith.constant 0 : index
    %c0_15 = arith.constant 0 : index
    %6 = vector.load %arg3[%c0_12, %c3, %c0_13, %c0_14, %c0_15] : memref<1x22x1x8x128xf32, #tpu.memory_space<vmem>>, vector<1x3x1x8x128xf32>
    %7 = vector.shape_cast %6 : vector<1x3x1x8x128xf32> to vector<3x8x128xf32>
    %8 = arith.negf %7 : vector<3x8x128xf32>
    %9 = math.exp %8 : vector<3x8x128xf32>
    %cst = arith.constant 1.000000e+00 : f32
    %10 = vector.broadcast %cst : f32 to vector<3x8x128xf32>
    %11 = arith.addf %10, %9 : vector<3x8x128xf32>
    %12 = arith.divf %10, %11 : vector<3x8x128xf32>
    %cst_16 = arith.constant 1.450000e+01 : f32
    %13 = vector.broadcast %cst_16 : f32 to vector<3x8x128xf32>
    %14 = arith.mulf %13, %12 : vector<3x8x128xf32>
    %cst_17 = arith.constant 5.000000e-01 : f32
    %15 = vector.broadcast %cst_17 : f32 to vector<3x8x128xf32>
    %16 = arith.addf %15, %14 : vector<3x8x128xf32>
    %c0_18 = arith.constant 0 : index
    %c0_19 = arith.constant 0 : index
    %c16 = arith.constant 16 : index
    %17 = vector.load %arg2[%c0_18, %c0_19, %c16] : memref<1x1x25xf32, #tpu.memory_space<vmem>>, vector<1x1x1xf32>
    %18 = vector.extract %17[0, 0, 0] : f32 from vector<1x1x1xf32>
    %c0_20 = arith.constant 0 : index
    %c0_21 = arith.constant 0 : index
    %c17 = arith.constant 17 : index
    %19 = vector.load %arg2[%c0_20, %c0_21, %c17] : memref<1x1x25xf32, #tpu.memory_space<vmem>>, vector<1x1x1xf32>
    %20 = vector.extract %19[0, 0, 0] : f32 from vector<1x1x1xf32>
    %c0_22 = arith.constant 0 : index
    %c0_23 = arith.constant 0 : index
    %c19 = arith.constant 19 : index
    %21 = vector.load %arg2[%c0_22, %c0_23, %c19] : memref<1x1x25xf32, #tpu.memory_space<vmem>>, vector<1x1x1xf32>
    %22 = vector.extract %21[0, 0, 0] : f32 from vector<1x1x1xf32>
    %c0_24 = arith.constant 0 : index
    %c0_25 = arith.constant 0 : index
    %c20 = arith.constant 20 : index
    %23 = vector.load %arg2[%c0_24, %c0_25, %c20] : memref<1x1x25xf32, #tpu.memory_space<vmem>>, vector<1x1x1xf32>
    %24 = vector.extract %23[0, 0, 0] : f32 from vector<1x1x1xf32>
    %cst_26 = arith.constant 3.125000e-02 : f32
    %25 = arith.mulf %24, %cst_26 : f32
    %cst_27 = arith.constant 3.125000e-02 : f32
    %26 = arith.mulf %20, %cst_27 : f32
    %27 = arith.subf %25, %26 : f32
    %cst_28 = arith.constant 3.125000e-02 : f32
    %28 = arith.mulf %22, %cst_28 : f32
    %29 = arith.subf %27, %28 : f32
    %cst_29 = arith.constant 3.125000e-02 : f32
    %30 = arith.mulf %18, %cst_29 : f32
    %31 = arith.addf %29, %30 : f32
    %cst_30 = arith.constant 1.000000e-01 : f32
    %32 = arith.mulf %cst_30, %31 : f32
    %33 = arith.mulf %18, %24 : f32
    %34 = arith.mulf %20, %22 : f32
    %35 = arith.subf %33, %34 : f32
    %36 = arith.divf %32, %35 : f32
    %37 = vector.broadcast %36 : f32 to vector<8x128xf32>
    %38 = arith.mulf %5, %37 : vector<8x128xf32>
    %39 = vector.shape_cast %38 : vector<8x128xf32> to vector<1x8x128xf32>
    %40 = vector.broadcast %39 : vector<1x8x128xf32> to vector<3x8x128xf32>
    %41 = arith.mulf %16, %40 : vector<3x8x128xf32>
    %c0_31 = arith.constant 0 : index
    %c12 = arith.constant 12 : index
    %c0_32 = arith.constant 0 : index
    %c0_33 = arith.constant 0 : index
    %c0_34 = arith.constant 0 : index
    %42 = vector.load %arg4[%c0_31, %c12, %c0_32, %c0_33, %c0_34] : memref<1x31x1x8x128xf32, #tpu.memory_space<vmem>>, vector<1x3x1x8x128xf32>
    %43 = vector.shape_cast %42 : vector<1x3x1x8x128xf32> to vector<3x8x128xf32>
    %44 = vector.shape_cast %41 : vector<3x8x128xf32> to vector<1x3x1x8x128xf32>
    tpu.vector_store %arg4[%c0_31, %c12, %c0_32, %c0_33, %c0_34], %44 {strides = array<i32>} : memref<1x31x1x8x128xf32, #tpu.memory_space<vmem>>, vector<1x3x1x8x128xf32>,
    %c0_35 = arith.constant 0 : index
    %c6 = arith.constant 6 : index
    %c0_36 = arith.constant 0 : index
    %c0_37 = arith.constant 0 : index
    %c0_38 = arith.constant 0 : index
    %45 = vector.load %arg3[%c0_35, %c6, %c0_36, %c0_37, %c0_38] : memref<1x22x1x8x128xf32, #tpu.memory_space<vmem>>, vector<1x1x1x8x128xf32>
    %46 = vector.shape_cast %45 : vector<1x1x1x8x128xf32> to vector<8x128xf32>
    %c0_39 = arith.constant 0 : index
    %c7 = arith.constant 7 : index
    %c0_40 = arith.constant 0 : index
    %c0_41 = arith.constant 0 : index
    %c0_42 = arith.constant 0 : index
    %47 = vector.load %arg3[%c0_39, %c7, %c0_40, %c0_41, %c0_42] : memref<1x22x1x8x128xf32, #tpu.memory_space<vmem>>, vector<1x1x1x8x128xf32>
    %48 = vector.shape_cast %47 : vector<1x1x1x8x128xf32> to vector<8x128xf32>
    %c0_43 = arith.constant 0 : index
    %c8 = arith.constant 8 : index
    %c0_44 = arith.constant 0 : index
    %c0_45 = arith.constant 0 : index
    %c0_46 = arith.constant 0 : index
    %49 = vector.load %arg3[%c0_43, %c8, %c0_44, %c0_45, %c0_46] : memref<1x22x1x8x128xf32, #tpu.memory_space<vmem>>, vector<1x1x1x8x128xf32>
    %50 = vector.shape_cast %49 : vector<1x1x1x8x128xf32> to vector<8x128xf32>
    %c0_47 = arith.constant 0 : index
    %c9 = arith.constant 9 : index
    %c0_48 = arith.constant 0 : index
    %c0_49 = arith.constant 0 : index
    %c0_50 = arith.constant 0 : index
    %51 = vector.load %arg3[%c0_47, %c9, %c0_48, %c0_49, %c0_50] : memref<1x22x1x8x128xf32, #tpu.memory_space<vmem>>, vector<1x1x1x8x128xf32>
    %52 = vector.shape_cast %51 : vector<1x1x1x8x128xf32> to vector<8x128xf32>
    %53 = arith.mulf %46, %46 : vector<8x128xf32>
    %54 = arith.mulf %48, %48 : vector<8x128xf32>
    %55 = arith.addf %53, %54 : vector<8x128xf32>
    %56 = arith.mulf %50, %50 : vector<8x128xf32>
    %57 = arith.addf %55, %56 : vector<8x128xf32>
    %58 = arith.mulf %52, %52 : vector<8x128xf32>
    %59 = arith.addf %57, %58 : vector<8x128xf32>
    %60 = math.sqrt %59 : vector<8x128xf32>
    %cst_51 = arith.constant 9.99999993E-9 : f32
    %61 = vector.broadcast %cst_51 : f32 to vector<8x128xf32>
    %62 = arith.addf %60, %61 : vector<8x128xf32>
    %cst_52 = arith.constant 1.000000e+00 : f32
    %63 = vector.broadcast %cst_52 : f32 to vector<8x128xf32>
    %64 = arith.divf %63, %62 : vector<8x128xf32>
    %65 = arith.mulf %46, %64 : vector<8x128xf32>
    %66 = arith.mulf %48, %64 : vector<8x128xf32>
    %67 = arith.mulf %50, %64 : vector<8x128xf32>
    %68 = arith.mulf %52, %64 : vector<8x128xf32>
    %c0_53 = arith.constant 0 : index
    %c15 = arith.constant 15 : index
    %c0_54 = arith.constant 0 : index
    %c0_55 = arith.constant 0 : index
    %c0_56 = arith.constant 0 : index
    %69 = vector.load %arg4[%c0_53, %c15, %c0_54, %c0_55, %c0_56] : memref<1x31x1x8x128xf32, #tpu.memory_space<vmem>>, vector<1x1x1x8x128xf32>
    %70 = vector.shape_cast %69 : vector<1x1x1x8x128xf32> to vector<8x128xf32>
    %71 = vector.shape_cast %65 : vector<8x128xf32> to vector<1x1x1x8x128xf32>
    tpu.vector_store %arg4[%c0_53, %c15, %c0_54, %c0_55, %c0_56], %71 {strides = array<i32>} : memref<1x31x1x8x128xf32, #tpu.memory_space<vmem>>, vector<1x1x1x8x128xf32>,
    %c0_57 = arith.constant 0 : index
    %c16_58 = arith.constant 16 : index
    %c0_59 = arith.constant 0 : index
    %c0_60 = arith.constant 0 : index
    %c0_61 = arith.constant 0 : index
    %72 = vector.load %arg4[%c0_57, %c16_58, %c0_59, %c0_60, %c0_61] : memref<1x31x1x8x128xf32, #tpu.memory_space<vmem>>, vector<1x1x1x8x128xf32>
    %73 = vector.shape_cast %72 : vector<1x1x1x8x128xf32> to vector<8x128xf32>
    %74 = vector.shape_cast %66 : vector<8x128xf32> to vector<1x1x1x8x128xf32>
    tpu.vector_store %arg4[%c0_57, %c16_58, %c0_59, %c0_60, %c0_61], %74 {strides = array<i32>} : memref<1x31x1x8x128xf32, #tpu.memory_space<vmem>>, vector<1x1x1x8x128xf32>,
    %c0_62 = arith.constant 0 : index
    %c17_63 = arith.constant 17 : index
    %c0_64 = arith.constant 0 : index
    %c0_65 = arith.constant 0 : index
    %c0_66 = arith.constant 0 : index
    %75 = vector.load %arg4[%c0_62, %c17_63, %c0_64, %c0_65, %c0_66] : memref<1x31x1x8x128xf32, #tpu.memory_space<vmem>>, vector<1x1x1x8x128xf32>
    %76 = vector.shape_cast %75 : vector<1x1x1x8x128xf32> to vector<8x128xf32>
    %77 = vector.shape_cast %67 : vector<8x128xf32> to vector<1x1x1x8x128xf32>
    tpu.vector_store %arg4[%c0_62, %c17_63, %c0_64, %c0_65, %c0_66], %77 {strides = array<i32>} : memref<1x31x1x8x128xf32, #tpu.memory_space<vmem>>, vector<1x1x1x8x128xf32>,
    %c0_67 = arith.constant 0 : index
    %c18 = arith.constant 18 : index
    %c0_68 = arith.constant 0 : index
    %c0_69 = arith.constant 0 : index
    %c0_70 = arith.constant 0 : index
    %78 = vector.load %arg4[%c0_67, %c18, %c0_68, %c0_69, %c0_70] : memref<1x31x1x8x128xf32, #tpu.memory_space<vmem>>, vector<1x1x1x8x128xf32>
    %79 = vector.shape_cast %78 : vector<1x1x1x8x128xf32> to vector<8x128xf32>
    %80 = vector.shape_cast %68 : vector<8x128xf32> to vector<1x1x1x8x128xf32>
    tpu.vector_store %arg4[%c0_67, %c18, %c0_68, %c0_69, %c0_70], %80 {strides = array<i32>} : memref<1x31x1x8x128xf32, #tpu.memory_space<vmem>>, vector<1x1x1x8x128xf32>,
    %81 = arith.mulf %65, %65 : vector<8x128xf32>
    %82 = arith.mulf %66, %66 : vector<8x128xf32>
    %83 = arith.addf %81, %82 : vector<8x128xf32>
    %84 = arith.mulf %67, %67 : vector<8x128xf32>
    %85 = arith.addf %83, %84 : vector<8x128xf32>
    %86 = arith.mulf %68, %68 : vector<8x128xf32>
    %87 = arith.addf %85, %86 : vector<8x128xf32>
    %cst_71 = arith.constant 9.99999993E-9 : f32
    %88 = vector.broadcast %cst_71 : f32 to vector<8x128xf32>
    %89 = arith.addf %87, %88 : vector<8x128xf32>
    %cst_72 = arith.constant 2.000000e+00 : f32
    %90 = vector.broadcast %cst_72 : f32 to vector<8x128xf32>
    %91 = arith.divf %90, %89 : vector<8x128xf32>
    %92 = arith.mulf %66, %66 : vector<8x128xf32>
    %93 = arith.mulf %67, %67 : vector<8x128xf32>
    %94 = arith.addf %92, %93 : vector<8x128xf32>
    %95 = arith.mulf %91, %94 : vector<8x128xf32>
    %cst_73 = arith.constant 1.000000e+00 : f32
    %96 = vector.broadcast %cst_73 : f32 to vector<8x128xf32>
    %97 = arith.subf %96, %95 : vector<8x128xf32>
    %98 = arith.mulf %65, %66 : vector<8x128xf32>
    %99 = arith.mulf %67, %68 : vector<8x128xf32>
    %100 = arith.subf %98, %99 : vector<8x128xf32>
    %101 = arith.mulf %91, %100 : vector<8x128xf32>
    %102 = arith.mulf %65, %67 : vector<8x128xf32>
    %103 = arith.mulf %66, %68 : vector<8x128xf32>
    %104 = arith.addf %102, %103 : vector<8x128xf32>
    %105 = arith.mulf %91, %104 : vector<8x128xf32>
    %106 = arith.mulf %65, %66 : vector<8x128xf32>
    %107 = arith.mulf %67, %68 : vector<8x128xf32>
    %108 = arith.addf %106, %107 : vector<8x128xf32>
    %109 = arith.mulf %91, %108 : vector<8x128xf32>
    %110 = arith.mulf %65, %65 : vector<8x128xf32>
    %111 = arith.mulf %67, %67 : vector<8x128xf32>
    %112 = arith.addf %110, %111 : vector<8x128xf32>
    %113 = arith.mulf %91, %112 : vector<8x128xf32>
    %cst_74 = arith.constant 1.000000e+00 : f32
    %114 = vector.broadcast %cst_74 : f32 to vector<8x128xf32>
    %115 = arith.subf %114, %113 : vector<8x128xf32>
    %116 = arith.mulf %66, %67 : vector<8x128xf32>
    %117 = arith.mulf %65, %68 : vector<8x128xf32>
    %118 = arith.subf %116, %117 : vector<8x128xf32>
    %119 = arith.mulf %91, %118 : vector<8x128xf32>
    %120 = arith.mulf %65, %67 : vector<8x128xf32>
    %121 = arith.mulf %66, %68 : vector<8x128xf32>
    %122 = arith.subf %120, %121 : vector<8x128xf32>
    %123 = arith.mulf %91, %122 : vector<8x128xf32>
    %124 = arith.mulf %66, %67 : vector<8x128xf32>
    %125 = arith.mulf %65, %68 : vector<8x128xf32>
    %126 = arith.addf %124, %125 : vector<8x128xf32>
    %127 = arith.mulf %91, %126 : vector<8x128xf32>
    %128 = arith.mulf %65, %65 : vector<8x128xf32>
    %129 = arith.mulf %66, %66 : vector<8x128xf32>
    %130 = arith.addf %128, %129 : vector<8x128xf32>
    %131 = arith.mulf %91, %130 : vector<8x128xf32>
    %cst_75 = arith.constant 1.000000e+00 : f32
    %132 = vector.broadcast %cst_75 : f32 to vector<8x128xf32>
    %133 = arith.subf %132, %131 : vector<8x128xf32>
    %134 = arith.mulf %41, %41 : vector<3x8x128xf32>
    %135 = vector.extract_strided_slice %134 {offsets = [0, 0, 0], sizes = [1, 8, 128], strides = [1, 1, 1]} : vector<3x8x128xf32> to vector<1x8x128xf32>
    %136 = vector.shape_cast %135 : vector<1x8x128xf32> to vector<8x128xf32>
    %137 = vector.extract_strided_slice %134 {offsets = [1, 0, 0], sizes = [1, 8, 128], strides = [1, 1, 1]} : vector<3x8x128xf32> to vector<1x8x128xf32>
    %138 = vector.shape_cast %137 : vector<1x8x128xf32> to vector<8x128xf32>
    %139 = vector.extract_strided_slice %134 {offsets = [2, 0, 0], sizes = [1, 8, 128], strides = [1, 1, 1]} : vector<3x8x128xf32> to vector<1x8x128xf32>
    %140 = vector.shape_cast %139 : vector<1x8x128xf32> to vector<8x128xf32>
    %141 = arith.mulf %97, %136 : vector<8x128xf32>
    %142 = arith.mulf %101, %138 : vector<8x128xf32>
    %143 = arith.mulf %105, %140 : vector<8x128xf32>
    %144 = arith.mulf %109, %136 : vector<8x128xf32>
    %145 = arith.mulf %115, %138 : vector<8x128xf32>
    %146 = arith.mulf %119, %140 : vector<8x128xf32>
    %147 = arith.mulf %123, %136 : vector<8x128xf32>
    %148 = arith.mulf %127, %138 : vector<8x128xf32>
    %149 = arith.mulf %133, %140 : vector<8x128xf32>
    %150 = arith.mulf %141, %97 : vector<8x128xf32>
    %151 = arith.mulf %142, %101 : vector<8x128xf32>
    %152 = arith.addf %150, %151 : vector<8x128xf32>
    %153 = arith.mulf %143, %105 : vector<8x128xf32>
    %154 = arith.addf %152, %153 : vector<8x128xf32>
    %155 = arith.mulf %141, %109 : vector<8x128xf32>
    %156 = arith.mulf %142, %115 : vector<8x128xf32>
    %157 = arith.addf %155, %156 : vector<8x128xf32>
    %158 = arith.mulf %143, %119 : vector<8x128xf32>
    %159 = arith.addf %157, %158 : vector<8x128xf32>
    %160 = arith.mulf %141, %123 : vector<8x128xf32>
    %161 = arith.mulf %142, %127 : vector<8x128xf32>
    %162 = arith.addf %160, %161 : vector<8x128xf32>
    %163 = arith.mulf %143, %133 : vector<8x128xf32>
    %164 = arith.addf %162, %163 : vector<8x128xf32>
    %165 = arith.mulf %144, %109 : vector<8x128xf32>
    %166 = arith.mulf %145, %115 : vector<8x128xf32>
    %167 = arith.addf %165, %166 : vector<8x128xf32>
    %168 = arith.mulf %146, %119 : vector<8x128xf32>
    %169 = arith.addf %167, %168 : vector<8x128xf32>
    %170 = arith.mulf %144, %123 : vector<8x128xf32>
    %171 = arith.mulf %145, %127 : vector<8x128xf32>
    %172 = arith.addf %170, %171 : vector<8x128xf32>
    %173 = arith.mulf %146, %133 : vector<8x128xf32>
    %174 = arith.addf %172, %173 : vector<8x128xf32>
    %175 = arith.mulf %147, %123 : vector<8x128xf32>
    %176 = arith.mulf %148, %127 : vector<8x128xf32>
    %177 = arith.addf %175, %176 : vector<8x128xf32>
    %178 = arith.mulf %149, %133 : vector<8x128xf32>
    %179 = arith.addf %177, %178 : vector<8x128xf32>
    %c0_76 = arith.constant 0 : index
    %c0_77 = arith.constant 0 : index
    %c0_78 = arith.constant 0 : index
    %180 = vector.load %arg2[%c0_76, %c0_77, %c0_78] : memref<1x1x25xf32, #tpu.memory_space<vmem>>, vector<1x1x1xf32>
    %181 = vector.extract %180[0, 0, 0] : f32 from vector<1x1x1xf32>
    %c0_79 = arith.constant 0 : index
    %c0_80 = arith.constant 0 : index
    %c1_81 = arith.constant 1 : index
    %182 = vector.load %arg2[%c0_79, %c0_80, %c1_81] : memref<1x1x25xf32, #tpu.memory_space<vmem>>, vector<1x1x1xf32>
    %183 = vector.extract %182[0, 0, 0] : f32 from vector<1x1x1xf32>
    %c0_82 = arith.constant 0 : index
    %c0_83 = arith.constant 0 : index
    %c2_84 = arith.constant 2 : index
    %184 = vector.load %arg2[%c0_82, %c0_83, %c2_84] : memref<1x1x25xf32, #tpu.memory_space<vmem>>, vector<1x1x1xf32>
    %185 = vector.extract %184[0, 0, 0] : f32 from vector<1x1x1xf32>
    %c0_85 = arith.constant 0 : index
    %c0_86 = arith.constant 0 : index
    %c4 = arith.constant 4 : index
    %186 = vector.load %arg2[%c0_85, %c0_86, %c4] : memref<1x1x25xf32, #tpu.memory_space<vmem>>, vector<1x1x1xf32>
    %187 = vector.extract %186[0, 0, 0] : f32 from vector<1x1x1xf32>
    %c0_87 = arith.constant 0 : index
    %c0_88 = arith.constant 0 : index
    %c5 = arith.constant 5 : index
    %188 = vector.load %arg2[%c0_87, %c0_88, %c5] : memref<1x1x25xf32, #tpu.memory_space<vmem>>, vector<1x1x1xf32>
    %189 = vector.extract %188[0, 0, 0] : f32 from vector<1x1x1xf32>
    %c0_89 = arith.constant 0 : index
    %c0_90 = arith.constant 0 : index
    %c6_91 = arith.constant 6 : index
    %190 = vector.load %arg2[%c0_89, %c0_90, %c6_91] : memref<1x1x25xf32, #tpu.memory_space<vmem>>, vector<1x1x1xf32>
    %191 = vector.extract %190[0, 0, 0] : f32 from vector<1x1x1xf32>
    %c0_92 = arith.constant 0 : index
    %c0_93 = arith.constant 0 : index
    %c8_94 = arith.constant 8 : index
    %192 = vector.load %arg2[%c0_92, %c0_93, %c8_94] : memref<1x1x25xf32, #tpu.memory_space<vmem>>, vector<1x1x1xf32>
    %193 = vector.extract %192[0, 0, 0] : f32 from vector<1x1x1xf32>
    %c0_95 = arith.constant 0 : index
    %c0_96 = arith.constant 0 : index
    %c9_97 = arith.constant 9 : index
    %194 = vector.load %arg2[%c0_95, %c0_96, %c9_97] : memref<1x1x25xf32, #tpu.memory_space<vmem>>, vector<1x1x1xf32>
    %195 = vector.extract %194[0, 0, 0] : f32 from vector<1x1x1xf32>
    %c0_98 = arith.constant 0 : index
    %c0_99 = arith.constant 0 : index
    %c10 = arith.constant 10 : index
    %196 = vector.load %arg2[%c0_98, %c0_99, %c10] : memref<1x1x25xf32, #tpu.memory_space<vmem>>, vector<1x1x1xf32>
    %197 = vector.extract %196[0, 0, 0] : f32 from vector<1x1x1xf32>
    %198 = vector.broadcast %181 : f32 to vector<8x128xf32>
    %199 = arith.mulf %154, %198 : vector<8x128xf32>
    %200 = vector.broadcast %183 : f32 to vector<8x128xf32>
    %201 = arith.mulf %159, %200 : vector<8x128xf32>
    %202 = arith.addf %199, %201 : vector<8x128xf32>
    %203 = vector.broadcast %185 : f32 to vector<8x128xf32>
    %204 = arith.mulf %164, %203 : vector<8x128xf32>
    %205 = arith.addf %202, %204 : vector<8x128xf32>
    %206 = vector.broadcast %181 : f32 to vector<8x128xf32>
    %207 = arith.mulf %159, %206 : vector<8x128xf32>
    %208 = vector.broadcast %183 : f32 to vector<8x128xf32>
    %209 = arith.mulf %169, %208 : vector<8x128xf32>
    %210 = arith.addf %207, %209 : vector<8x128xf32>
    %211 = vector.broadcast %185 : f32 to vector<8x128xf32>
    %212 = arith.mulf %174, %211 : vector<8x128xf32>
    %213 = arith.addf %210, %212 : vector<8x128xf32>
    %214 = vector.broadcast %181 : f32 to vector<8x128xf32>
    %215 = arith.mulf %164, %214 : vector<8x128xf32>
    %216 = vector.broadcast %183 : f32 to vector<8x128xf32>
    %217 = arith.mulf %174, %216 : vector<8x128xf32>
    %218 = arith.addf %215, %217 : vector<8x128xf32>
    %219 = vector.broadcast %185 : f32 to vector<8x128xf32>
    %220 = arith.mulf %179, %219 : vector<8x128xf32>
    %221 = arith.addf %218, %220 : vector<8x128xf32>
    %222 = vector.broadcast %187 : f32 to vector<8x128xf32>
    %223 = arith.mulf %154, %222 : vector<8x128xf32>
    %224 = vector.broadcast %189 : f32 to vector<8x128xf32>
    %225 = arith.mulf %159, %224 : vector<8x128xf32>
    %226 = arith.addf %223, %225 : vector<8x128xf32>
    %227 = vector.broadcast %191 : f32 to vector<8x128xf32>
    %228 = arith.mulf %164, %227 : vector<8x128xf32>
    %229 = arith.addf %226, %228 : vector<8x128xf32>
    %230 = vector.broadcast %187 : f32 to vector<8x128xf32>
    %231 = arith.mulf %159, %230 : vector<8x128xf32>
    %232 = vector.broadcast %189 : f32 to vector<8x128xf32>
    %233 = arith.mulf %169, %232 : vector<8x128xf32>
    %234 = arith.addf %231, %233 : vector<8x128xf32>
    %235 = vector.broadcast %191 : f32 to vector<8x128xf32>
    %236 = arith.mulf %174, %235 : vector<8x128xf32>
    %237 = arith.addf %234, %236 : vector<8x128xf32>
    %238 = vector.broadcast %187 : f32 to vector<8x128xf32>
    %239 = arith.mulf %164, %238 : vector<8x128xf32>
    %240 = vector.broadcast %189 : f32 to vector<8x128xf32>
    %241 = arith.mulf %174, %240 : vector<8x128xf32>
    %242 = arith.addf %239, %241 : vector<8x128xf32>
    %243 = vector.broadcast %191 : f32 to vector<8x128xf32>
    %244 = arith.mulf %179, %243 : vector<8x128xf32>
    %245 = arith.addf %242, %244 : vector<8x128xf32>
    %246 = vector.broadcast %193 : f32 to vector<8x128xf32>
    %247 = arith.mulf %154, %246 : vector<8x128xf32>
    %248 = vector.broadcast %195 : f32 to vector<8x128xf32>
    %249 = arith.mulf %159, %248 : vector<8x128xf32>
    %250 = arith.addf %247, %249 : vector<8x128xf32>
    %251 = vector.broadcast %197 : f32 to vector<8x128xf32>
    %252 = arith.mulf %164, %251 : vector<8x128xf32>
    %253 = arith.addf %250, %252 : vector<8x128xf32>
    %254 = vector.broadcast %193 : f32 to vector<8x128xf32>
    %255 = arith.mulf %159, %254 : vector<8x128xf32>
    %256 = vector.broadcast %195 : f32 to vector<8x128xf32>
    %257 = arith.mulf %169, %256 : vector<8x128xf32>
    %258 = arith.addf %255, %257 : vector<8x128xf32>
    %259 = vector.broadcast %197 : f32 to vector<8x128xf32>
    %260 = arith.mulf %174, %259 : vector<8x128xf32>
    %261 = arith.addf %258, %260 : vector<8x128xf32>
    %262 = vector.broadcast %193 : f32 to vector<8x128xf32>
    %263 = arith.mulf %164, %262 : vector<8x128xf32>
    %264 = vector.broadcast %195 : f32 to vector<8x128xf32>
    %265 = arith.mulf %174, %264 : vector<8x128xf32>
    %266 = arith.addf %263, %265 : vector<8x128xf32>
    %267 = vector.broadcast %197 : f32 to vector<8x128xf32>
    %268 = arith.mulf %179, %267 : vector<8x128xf32>
    %269 = arith.addf %266, %268 : vector<8x128xf32>
    %270 = vector.broadcast %181 : f32 to vector<8x128xf32>
    %271 = arith.mulf %270, %205 : vector<8x128xf32>
    %272 = vector.broadcast %183 : f32 to vector<8x128xf32>
    %273 = arith.mulf %272, %213 : vector<8x128xf32>
    %274 = arith.addf %271, %273 : vector<8x128xf32>
    %275 = vector.broadcast %185 : f32 to vector<8x128xf32>
    %276 = arith.mulf %275, %221 : vector<8x128xf32>
    %277 = arith.addf %274, %276 : vector<8x128xf32>
    %278 = vector.broadcast %181 : f32 to vector<8x128xf32>
    %279 = arith.mulf %278, %229 : vector<8x128xf32>
    %280 = vector.broadcast %183 : f32 to vector<8x128xf32>
    %281 = arith.mulf %280, %237 : vector<8x128xf32>
    %282 = arith.addf %279, %281 : vector<8x128xf32>
    %283 = vector.broadcast %185 : f32 to vector<8x128xf32>
    %284 = arith.mulf %283, %245 : vector<8x128xf32>
    %285 = arith.addf %282, %284 : vector<8x128xf32>
    %286 = vector.broadcast %181 : f32 to vector<8x128xf32>
    %287 = arith.mulf %286, %253 : vector<8x128xf32>
    %288 = vector.broadcast %183 : f32 to vector<8x128xf32>
    %289 = arith.mulf %288, %261 : vector<8x128xf32>
    %290 = arith.addf %287, %289 : vector<8x128xf32>
    %291 = vector.broadcast %185 : f32 to vector<8x128xf32>
    %292 = arith.mulf %291, %269 : vector<8x128xf32>
    %293 = arith.addf %290, %292 : vector<8x128xf32>
    %294 = vector.broadcast %187 : f32 to vector<8x128xf32>
    %295 = arith.mulf %294, %229 : vector<8x128xf32>
    %296 = vector.broadcast %189 : f32 to vector<8x128xf32>
    %297 = arith.mulf %296, %237 : vector<8x128xf32>
    %298 = arith.addf %295, %297 : vector<8x128xf32>
    %299 = vector.broadcast %191 : f32 to vector<8x128xf32>
    %300 = arith.mulf %299, %245 : vector<8x128xf32>
    %301 = arith.addf %298, %300 : vector<8x128xf32>
    %302 = vector.broadcast %187 : f32 to vector<8x128xf32>
    %303 = arith.mulf %302, %253 : vector<8x128xf32>
    %304 = vector.broadcast %189 : f32 to vector<8x128xf32>
    %305 = arith.mulf %304, %261 : vector<8x128xf32>
    %306 = arith.addf %303, %305 : vector<8x128xf32>
    %307 = vector.broadcast %191 : f32 to vector<8x128xf32>
    %308 = arith.mulf %307, %269 : vector<8x128xf32>
    %309 = arith.addf %306, %308 : vector<8x128xf32>
    %310 = vector.broadcast %193 : f32 to vector<8x128xf32>
    %311 = arith.mulf %310, %253 : vector<8x128xf32>
    %312 = vector.broadcast %195 : f32 to vector<8x128xf32>
    %313 = arith.mulf %312, %261 : vector<8x128xf32>
    %314 = arith.addf %311, %313 : vector<8x128xf32>
    %315 = vector.broadcast %197 : f32 to vector<8x128xf32>
    %316 = arith.mulf %315, %269 : vector<8x128xf32>
    %317 = arith.addf %314, %316 : vector<8x128xf32>
    %c0_100 = arith.constant 0 : index
    %c3_101 = arith.constant 3 : index
    %c0_102 = arith.constant 0 : index
    %c0_103 = arith.constant 0 : index
    %c0_104 = arith.constant 0 : index
    %318 = vector.load %arg4[%c0_100, %c3_101, %c0_102, %c0_103, %c0_104] : memref<1x31x1x8x128xf32, #tpu.memory_space<vmem>>, vector<1x1x1x8x128xf32>
    %319 = vector.shape_cast %318 : vector<1x1x1x8x128xf32> to vector<8x128xf32>
    %320 = vector.shape_cast %277 : vector<8x128xf32> to vector<1x1x1x8x128xf32>
    tpu.vector_store %arg4[%c0_100, %c3_101, %c0_102, %c0_103, %c0_104], %320 {strides = array<i32>} : memref<1x31x1x8x128xf32, #tpu.memory_space<vmem>>, vector<1x1x1x8x128xf32>,
    %c0_105 = arith.constant 0 : index
    %c4_106 = arith.constant 4 : index
    %c0_107 = arith.constant 0 : index
    %c0_108 = arith.constant 0 : index
    %c0_109 = arith.constant 0 : index
    %321 = vector.load %arg4[%c0_105, %c4_106, %c0_107, %c0_108, %c0_109] : memref<1x31x1x8x128xf32, #tpu.memory_space<vmem>>, vector<1x1x1x8x128xf32>
    %322 = vector.shape_cast %321 : vector<1x1x1x8x128xf32> to vector<8x128xf32>
    %323 = vector.shape_cast %285 : vector<8x128xf32> to vector<1x1x1x8x128xf32>
    tpu.vector_store %arg4[%c0_105, %c4_106, %c0_107, %c0_108, %c0_109], %323 {strides = array<i32>} : memref<1x31x1x8x128xf32, #tpu.memory_space<vmem>>, vector<1x1x1x8x128xf32>,
    %c0_110 = arith.constant 0 : index
    %c5_111 = arith.constant 5 : index
    %c0_112 = arith.constant 0 : index
    %c0_113 = arith.constant 0 : index
    %c0_114 = arith.constant 0 : index
    %324 = vector.load %arg4[%c0_110, %c5_111, %c0_112, %c0_113, %c0_114] : memref<1x31x1x8x128xf32, #tpu.memory_space<vmem>>, vector<1x1x1x8x128xf32>
    %325 = vector.shape_cast %324 : vector<1x1x1x8x128xf32> to vector<8x128xf32>
    %326 = vector.shape_cast %293 : vector<8x128xf32> to vector<1x1x1x8x128xf32>
    tpu.vector_store %arg4[%c0_110, %c5_111, %c0_112, %c0_113, %c0_114], %326 {strides = array<i32>} : memref<1x31x1x8x128xf32, #tpu.memory_space<vmem>>, vector<1x1x1x8x128xf32>,
    %c0_115 = arith.constant 0 : index
    %c6_116 = arith.constant 6 : index
    %c0_117 = arith.constant 0 : index
    %c0_118 = arith.constant 0 : index
    %c0_119 = arith.constant 0 : index
    %327 = vector.load %arg4[%c0_115, %c6_116, %c0_117, %c0_118, %c0_119] : memref<1x31x1x8x128xf32, #tpu.memory_space<vmem>>, vector<1x1x1x8x128xf32>
    %328 = vector.shape_cast %327 : vector<1x1x1x8x128xf32> to vector<8x128xf32>
    %329 = vector.shape_cast %285 : vector<8x128xf32> to vector<1x1x1x8x128xf32>
    tpu.vector_store %arg4[%c0_115, %c6_116, %c0_117, %c0_118, %c0_119], %329 {strides = array<i32>} : memref<1x31x1x8x128xf32, #tpu.memory_space<vmem>>, vector<1x1x1x8x128xf32>,
    %c0_120 = arith.constant 0 : index
    %c7_121 = arith.constant 7 : index
    %c0_122 = arith.constant 0 : index
    %c0_123 = arith.constant 0 : index
    %c0_124 = arith.constant 0 : index
    %330 = vector.load %arg4[%c0_120, %c7_121, %c0_122, %c0_123, %c0_124] : memref<1x31x1x8x128xf32, #tpu.memory_space<vmem>>, vector<1x1x1x8x128xf32>
    %331 = vector.shape_cast %330 : vector<1x1x1x8x128xf32> to vector<8x128xf32>
    %332 = vector.shape_cast %301 : vector<8x128xf32> to vector<1x1x1x8x128xf32>
    tpu.vector_store %arg4[%c0_120, %c7_121, %c0_122, %c0_123, %c0_124], %332 {strides = array<i32>} : memref<1x31x1x8x128xf32, #tpu.memory_space<vmem>>, vector<1x1x1x8x128xf32>,
    %c0_125 = arith.constant 0 : index
    %c8_126 = arith.constant 8 : index
    %c0_127 = arith.constant 0 : index
    %c0_128 = arith.constant 0 : index
    %c0_129 = arith.constant 0 : index
    %333 = vector.load %arg4[%c0_125, %c8_126, %c0_127, %c0_128, %c0_129] : memref<1x31x1x8x128xf32, #tpu.memory_space<vmem>>, vector<1x1x1x8x128xf32>
    %334 = vector.shape_cast %333 : vector<1x1x1x8x128xf32> to vector<8x128xf32>
    %335 = vector.shape_cast %309 : vector<8x128xf32> to vector<1x1x1x8x128xf32>
    tpu.vector_store %arg4[%c0_125, %c8_126, %c0_127, %c0_128, %c0_129], %335 {strides = array<i32>} : memref<1x31x1x8x128xf32, #tpu.memory_space<vmem>>, vector<1x1x1x8x128xf32>,
    %c0_130 = arith.constant 0 : index
    %c9_131 = arith.constant 9 : index
    %c0_132 = arith.constant 0 : index
    %c0_133 = arith.constant 0 : index
    %c0_134 = arith.constant 0 : index
    %336 = vector.load %arg4[%c0_130, %c9_131, %c0_132, %c0_133, %c0_134] : memref<1x31x1x8x128xf32, #tpu.memory_space<vmem>>, vector<1x1x1x8x128xf32>
    %337 = vector.shape_cast %336 : vector<1x1x1x8x128xf32> to vector<8x128xf32>
    %338 = vector.shape_cast %293 : vector<8x128xf32> to vector<1x1x1x8x128xf32>
    tpu.vector_store %arg4[%c0_130, %c9_131, %c0_132, %c0_133, %c0_134], %338 {strides = array<i32>} : memref<1x31x1x8x128xf32, #tpu.memory_space<vmem>>, vector<1x1x1x8x128xf32>,
    %c0_135 = arith.constant 0 : index
    %c10_136 = arith.constant 10 : index
    %c0_137 = arith.constant 0 : index
    %c0_138 = arith.constant 0 : index
    %c0_139 = arith.constant 0 : index
    %339 = vector.load %arg4[%c0_135, %c10_136, %c0_137, %c0_138, %c0_139] : memref<1x31x1x8x128xf32, #tpu.memory_space<vmem>>, vector<1x1x1x8x128xf32>
    %340 = vector.shape_cast %339 : vector<1x1x1x8x128xf32> to vector<8x128xf32>
    %341 = vector.shape_cast %309 : vector<8x128xf32> to vector<1x1x1x8x128xf32>
    tpu.vector_store %arg4[%c0_135, %c10_136, %c0_137, %c0_138, %c0_139], %341 {strides = array<i32>} : memref<1x31x1x8x128xf32, #tpu.memory_space<vmem>>, vector<1x1x1x8x128xf32>,
    %c0_140 = arith.constant 0 : index
    %c11 = arith.constant 11 : index
    %c0_141 = arith.constant 0 : index
    %c0_142 = arith.constant 0 : index
    %c0_143 = arith.constant 0 : index
    %342 = vector.load %arg4[%c0_140, %c11, %c0_141, %c0_142, %c0_143] : memref<1x31x1x8x128xf32, #tpu.memory_space<vmem>>, vector<1x1x1x8x128xf32>
    %343 = vector.shape_cast %342 : vector<1x1x1x8x128xf32> to vector<8x128xf32>
    %344 = vector.shape_cast %317 : vector<8x128xf32> to vector<1x1x1x8x128xf32>
    tpu.vector_store %arg4[%c0_140, %c11, %c0_141, %c0_142, %c0_143], %344 {strides = array<i32>} : memref<1x31x1x8x128xf32, #tpu.memory_space<vmem>>, vector<1x1x1x8x128xf32>,
    %c0_144 = arith.constant 0 : index
    %c0_145 = arith.constant 0 : index
    %c16_146 = arith.constant 16 : index
    %345 = vector.load %arg2[%c0_144, %c0_145, %c16_146] : memref<1x1x25xf32, #tpu.memory_space<vmem>>, vector<1x1x1xf32>
    %346 = vector.extract %345[0, 0, 0] : f32 from vector<1x1x1xf32>
    %c0_147 = arith.constant 0 : index
    %c0_148 = arith.constant 0 : index
    %c17_149 = arith.constant 17 : index
    %347 = vector.load %arg2[%c0_147, %c0_148, %c17_149] : memref<1x1x25xf32, #tpu.memory_space<vmem>>, vector<1x1x1xf32>
    %348 = vector.extract %347[0, 0, 0] : f32 from vector<1x1x1xf32>
    %c0_150 = arith.constant 0 : index
    %c0_151 = arith.constant 0 : index
    %c18_152 = arith.constant 18 : index
    %349 = vector.load %arg2[%c0_150, %c0_151, %c18_152] : memref<1x1x25xf32, #tpu.memory_space<vmem>>, vector<1x1x1xf32>
    %350 = vector.extract %349[0, 0, 0] : f32 from vector<1x1x1xf32>
    %c0_153 = arith.constant 0 : index
    %c0_154 = arith.constant 0 : index
    %c19_155 = arith.constant 19 : index
    %351 = vector.load %arg2[%c0_153, %c0_154, %c19_155] : memref<1x1x25xf32, #tpu.memory_space<vmem>>, vector<1x1x1xf32>
    %352 = vector.extract %351[0, 0, 0] : f32 from vector<1x1x1xf32>
    %c0_156 = arith.constant 0 : index
    %c0_157 = arith.constant 0 : index
    %c20_158 = arith.constant 20 : index
    %353 = vector.load %arg2[%c0_156, %c0_157, %c20_158] : memref<1x1x25xf32, #tpu.memory_space<vmem>>, vector<1x1x1xf32>
    %354 = vector.extract %353[0, 0, 0] : f32 from vector<1x1x1xf32>
    %c0_159 = arith.constant 0 : index
    %c0_160 = arith.constant 0 : index
    %c21 = arith.constant 21 : index
    %355 = vector.load %arg2[%c0_159, %c0_160, %c21] : memref<1x1x25xf32, #tpu.memory_space<vmem>>, vector<1x1x1xf32>
    %356 = vector.extract %355[0, 0, 0] : f32 from vector<1x1x1xf32>
    %c0_161 = arith.constant 0 : index
    %c0_162 = arith.constant 0 : index
    %c22 = arith.constant 22 : index
    %357 = vector.load %arg2[%c0_161, %c0_162, %c22] : memref<1x1x25xf32, #tpu.memory_space<vmem>>, vector<1x1x1xf32>
    %358 = vector.extract %357[0, 0, 0] : f32 from vector<1x1x1xf32>
    %c0_163 = arith.constant 0 : index
    %c0_164 = arith.constant 0 : index
    %c23 = arith.constant 23 : index
    %359 = vector.load %arg2[%c0_163, %c0_164, %c23] : memref<1x1x25xf32, #tpu.memory_space<vmem>>, vector<1x1x1xf32>
    %360 = vector.extract %359[0, 0, 0] : f32 from vector<1x1x1xf32>
    %c0_165 = arith.constant 0 : index
    %c0_166 = arith.constant 0 : index
    %c24 = arith.constant 24 : index
    %361 = vector.load %arg2[%c0_165, %c0_166, %c24] : memref<1x1x25xf32, #tpu.memory_space<vmem>>, vector<1x1x1xf32>
    %362 = vector.extract %361[0, 0, 0] : f32 from vector<1x1x1xf32>
    %363 = arith.mulf %354, %362 : f32
    %364 = arith.mulf %356, %360 : f32
    %365 = arith.subf %363, %364 : f32
    %366 = arith.mulf %346, %365 : f32
    %367 = arith.mulf %352, %362 : f32
    %368 = arith.mulf %356, %358 : f32
    %369 = arith.subf %367, %368 : f32
    %370 = arith.mulf %348, %369 : f32
    %371 = arith.subf %366, %370 : f32
    %372 = arith.mulf %352, %360 : f32
    %373 = arith.mulf %354, %358 : f32
    %374 = arith.subf %372, %373 : f32
    %375 = arith.mulf %350, %374 : f32
    %376 = arith.addf %371, %375 : f32
    %cst_167 = arith.constant 1.000000e+00 : f32
    %377 = arith.divf %cst_167, %376 : f32
    %378 = arith.mulf %354, %362 : f32
    %379 = arith.mulf %356, %360 : f32
    %380 = arith.subf %378, %379 : f32
    %381 = arith.mulf %380, %377 : f32
    %382 = arith.mulf %350, %360 : f32
    %383 = arith.mulf %348, %362 : f32
    %384 = arith.subf %382, %383 : f32
    %385 = arith.mulf %384, %377 : f32
    %386 = arith.mulf %348, %356 : f32
    %387 = arith.mulf %350, %354 : f32
    %388 = arith.subf %386, %387 : f32
    %389 = arith.mulf %388, %377 : f32
    %390 = arith.mulf %356, %358 : f32
    %391 = arith.mulf %352, %362 : f32
    %392 = arith.subf %390, %391 : f32
    %393 = arith.mulf %392, %377 : f32
    %394 = arith.mulf %346, %362 : f32
    %395 = arith.mulf %350, %358 : f32
    %396 = arith.subf %394, %395 : f32
    %397 = arith.mulf %396, %377 : f32
    %398 = arith.mulf %350, %352 : f32
    %399 = arith.mulf %346, %356 : f32
    %400 = arith.subf %398, %399 : f32
    %401 = arith.mulf %400, %377 : f32
    %402 = arith.mulf %352, %360 : f32
    %403 = arith.mulf %354, %358 : f32
    %404 = arith.subf %402, %403 : f32
    %405 = arith.mulf %404, %377 : f32
    %406 = arith.mulf %348, %358 : f32
    %407 = arith.mulf %346, %360 : f32
    %408 = arith.subf %406, %407 : f32
    %409 = arith.mulf %408, %377 : f32
    %410 = arith.mulf %346, %354 : f32
    %411 = arith.mulf %348, %352 : f32
    %412 = arith.subf %410, %411 : f32
    %413 = arith.mulf %412, %377 : f32
    %414 = vector.broadcast %381 : f32 to vector<8x128xf32>
    %415 = arith.mulf %414, %1 : vector<8x128xf32>
    %416 = vector.broadcast %385 : f32 to vector<8x128xf32>
    %417 = arith.mulf %416, %3 : vector<8x128xf32>
    %418 = arith.addf %415, %417 : vector<8x128xf32>
    %419 = vector.broadcast %389 : f32 to vector<8x128xf32>
    %420 = arith.addf %418, %419 : vector<8x128xf32>
    %421 = vector.broadcast %393 : f32 to vector<8x128xf32>
    %422 = arith.mulf %421, %1 : vector<8x128xf32>
    %423 = vector.broadcast %397 : f32 to vector<8x128xf32>
    %424 = arith.mulf %423, %3 : vector<8x128xf32>
    %425 = arith.addf %422, %424 : vector<8x128xf32>
    %426 = vector.broadcast %401 : f32 to vector<8x128xf32>
    %427 = arith.addf %425, %426 : vector<8x128xf32>
    %428 = vector.broadcast %405 : f32 to vector<8x128xf32>
    %429 = arith.mulf %428, %1 : vector<8x128xf32>
    %430 = vector.broadcast %409 : f32 to vector<8x128xf32>
    %431 = arith.mulf %430, %3 : vector<8x128xf32>
    %432 = arith.addf %429, %431 : vector<8x128xf32>
    %433 = vector.broadcast %413 : f32 to vector<8x128xf32>
    %434 = arith.addf %432, %433 : vector<8x128xf32>
    %435 = arith.mulf %420, %420 : vector<8x128xf32>
    %436 = arith.mulf %427, %427 : vector<8x128xf32>
    %437 = arith.addf %435, %436 : vector<8x128xf32>
    %438 = arith.mulf %434, %434 : vector<8x128xf32>
    %439 = arith.addf %437, %438 : vector<8x128xf32>
    %440 = math.rsqrt %439 : vector<8x128xf32>
    %441 = arith.mulf %420, %440 : vector<8x128xf32>
    %442 = arith.mulf %427, %440 : vector<8x128xf32>
    %443 = arith.mulf %434, %440 : vector<8x128xf32>
    %444 = vector.broadcast %181 : f32 to vector<8x128xf32>
    %445 = arith.mulf %444, %441 : vector<8x128xf32>
    %446 = vector.broadcast %183 : f32 to vector<8x128xf32>
    %447 = arith.mulf %446, %442 : vector<8x128xf32>
    %448 = arith.addf %445, %447 : vector<8x128xf32>
    %449 = vector.broadcast %185 : f32 to vector<8x128xf32>
    %450 = arith.mulf %449, %443 : vector<8x128xf32>
    %451 = arith.addf %448, %450 : vector<8x128xf32>
    %452 = vector.broadcast %187 : f32 to vector<8x128xf32>
    %453 = arith.mulf %452, %441 : vector<8x128xf32>
    %454 = vector.broadcast %189 : f32 to vector<8x128xf32>
    %455 = arith.mulf %454, %442 : vector<8x128xf32>
    %456 = arith.addf %453, %455 : vector<8x128xf32>
    %457 = vector.broadcast %191 : f32 to vector<8x128xf32>
    %458 = arith.mulf %457, %443 : vector<8x128xf32>
    %459 = arith.addf %456, %458 : vector<8x128xf32>
    %460 = vector.broadcast %193 : f32 to vector<8x128xf32>
    %461 = arith.mulf %460, %441 : vector<8x128xf32>
    %462 = vector.broadcast %195 : f32 to vector<8x128xf32>
    %463 = arith.mulf %462, %442 : vector<8x128xf32>
    %464 = arith.addf %461, %463 : vector<8x128xf32>
    %465 = vector.broadcast %197 : f32 to vector<8x128xf32>
    %466 = arith.mulf %465, %443 : vector<8x128xf32>
    %467 = arith.addf %464, %466 : vector<8x128xf32>
    %c0_168 = arith.constant 0 : index
    %c0_169 = arith.constant 0 : index
    %c3_170 = arith.constant 3 : index
    %468 = vector.load %arg2[%c0_168, %c0_169, %c3_170] : memref<1x1x25xf32, #tpu.memory_space<vmem>>, vector<1x1x1xf32>
    %469 = vector.extract %468[0, 0, 0] : f32 from vector<1x1x1xf32>
    %470 = arith.mulf %451, %5 : vector<8x128xf32>
    %471 = vector.broadcast %469 : f32 to vector<8x128xf32>
    %472 = arith.addf %471, %470 : vector<8x128xf32>
    %c0_171 = arith.constant 0 : index
    %c0_172 = arith.constant 0 : index
    %c0_173 = arith.constant 0 : index
    %c0_174 = arith.constant 0 : index
    %c0_175 = arith.constant 0 : index
    %473 = vector.load %arg4[%c0_171, %c0_172, %c0_173, %c0_174, %c0_175] : memref<1x31x1x8x128xf32, #tpu.memory_space<vmem>>, vector<1x1x1x8x128xf32>
    %474 = vector.shape_cast %473 : vector<1x1x1x8x128xf32> to vector<8x128xf32>
    %475 = vector.shape_cast %472 : vector<8x128xf32> to vector<1x1x1x8x128xf32>
    tpu.vector_store %arg4[%c0_171, %c0_172, %c0_173, %c0_174, %c0_175], %475 {strides = array<i32>} : memref<1x31x1x8x128xf32, #tpu.memory_space<vmem>>, vector<1x1x1x8x128xf32>,
    %c0_176 = arith.constant 0 : index
    %c0_177 = arith.constant 0 : index
    %c7_178 = arith.constant 7 : index
    %476 = vector.load %arg2[%c0_176, %c0_177, %c7_178] : memref<1x1x25xf32, #tpu.memory_space<vmem>>, vector<1x1x1xf32>
    %477 = vector.extract %476[0, 0, 0] : f32 from vector<1x1x1xf32>
    %478 = arith.mulf %459, %5 : vector<8x128xf32>
    %479 = vector.broadcast %477 : f32 to vector<8x128xf32>
    %480 = arith.addf %479, %478 : vector<8x128xf32>
    %c0_179 = arith.constant 0 : index
    %c1_180 = arith.constant 1 : index
    %c0_181 = arith.constant 0 : index
    %c0_182 = arith.constant 0 : index
    %c0_183 = arith.constant 0 : index
    %481 = vector.load %arg4[%c0_179, %c1_180, %c0_181, %c0_182, %c0_183] : memref<1x31x1x8x128xf32, #tpu.memory_space<vmem>>, vector<1x1x1x8x128xf32>
    %482 = vector.shape_cast %481 : vector<1x1x1x8x128xf32> to vector<8x128xf32>
    %483 = vector.shape_cast %480 : vector<8x128xf32> to vector<1x1x1x8x128xf32>
    tpu.vector_store %arg4[%c0_179, %c1_180, %c0_181, %c0_182, %c0_183], %483 {strides = array<i32>} : memref<1x31x1x8x128xf32, #tpu.memory_space<vmem>>, vector<1x1x1x8x128xf32>,
    %c0_184 = arith.constant 0 : index
    %c0_185 = arith.constant 0 : index
    %c11_186 = arith.constant 11 : index
    %484 = vector.load %arg2[%c0_184, %c0_185, %c11_186] : memref<1x1x25xf32, #tpu.memory_space<vmem>>, vector<1x1x1xf32>
    %485 = vector.extract %484[0, 0, 0] : f32 from vector<1x1x1xf32>
    %486 = arith.mulf %467, %5 : vector<8x128xf32>
    %487 = vector.broadcast %485 : f32 to vector<8x128xf32>
    %488 = arith.addf %487, %486 : vector<8x128xf32>
    %c0_187 = arith.constant 0 : index
    %c2_188 = arith.constant 2 : index
    %c0_189 = arith.constant 0 : index
    %c0_190 = arith.constant 0 : index
    %c0_191 = arith.constant 0 : index
    %489 = vector.load %arg4[%c0_187, %c2_188, %c0_189, %c0_190, %c0_191] : memref<1x31x1x8x128xf32, #tpu.memory_space<vmem>>, vector<1x1x1x8x128xf32>
    %490 = vector.shape_cast %489 : vector<1x1x1x8x128xf32> to vector<8x128xf32>
    %491 = vector.shape_cast %488 : vector<8x128xf32> to vector<1x1x1x8x128xf32>
    tpu.vector_store %arg4[%c0_187, %c2_188, %c0_189, %c0_190, %c0_191], %491 {strides = array<i32>} : memref<1x31x1x8x128xf32, #tpu.memory_space<vmem>>, vector<1x1x1x8x128xf32>,
    %c0_192 = arith.constant 0 : index
    %c10_193 = arith.constant 10 : index
    %c0_194 = arith.constant 0 : index
    %c0_195 = arith.constant 0 : index
    %c0_196 = arith.constant 0 : index
    %492 = vector.load %arg3[%c0_192, %c10_193, %c0_194, %c0_195, %c0_196] : memref<1x22x1x8x128xf32, #tpu.memory_space<vmem>>, vector<1x1x1x8x128xf32>
    %493 = vector.shape_cast %492 : vector<1x1x1x8x128xf32> to vector<1x8x128xf32>
    %cst_197 = arith.constant 1.000000e+00 : f32
    %494 = vector.broadcast %cst_197 : f32 to vector<1x8x128xf32>
    %495 = arith.mulf %493, %494 : vector<1x8x128xf32>
    %c0_198 = arith.constant 0 : index
    %c19_199 = arith.constant 19 : index
    %c0_200 = arith.constant 0 : index
    %c0_201 = arith.constant 0 : index
    %c0_202 = arith.constant 0 : index
    %496 = vector.load %arg4[%c0_198, %c19_199, %c0_200, %c0_201, %c0_202] : memref<1x31x1x8x128xf32, #tpu.memory_space<vmem>>, vector<1x1x1x8x128xf32>
    %497 = vector.shape_cast %496 : vector<1x1x1x8x128xf32> to vector<1x8x128xf32>
    %498 = vector.shape_cast %495 : vector<1x8x128xf32> to vector<1x1x1x8x128xf32>
    tpu.vector_store %arg4[%c0_198, %c19_199, %c0_200, %c0_201, %c0_202], %498 {strides = array<i32>} : memref<1x31x1x8x128xf32, #tpu.memory_space<vmem>>, vector<1x1x1x8x128xf32>,
    %c0_203 = arith.constant 0 : index
    %c11_204 = arith.constant 11 : index
    %c0_205 = arith.constant 0 : index
    %c0_206 = arith.constant 0 : index
    %c0_207 = arith.constant 0 : index
    %499 = vector.load %arg3[%c0_203, %c11_204, %c0_205, %c0_206, %c0_207] : memref<1x22x1x8x128xf32, #tpu.memory_space<vmem>>, vector<1x3x1x8x128xf32>
    %500 = vector.shape_cast %499 : vector<1x3x1x8x128xf32> to vector<3x8x128xf32>
    %cst_208 = arith.constant 2.500000e-02 : f32
    %501 = vector.broadcast %cst_208 : f32 to vector<3x8x128xf32>
    %502 = arith.mulf %500, %501 : vector<3x8x128xf32>
    %c0_209 = arith.constant 0 : index
    %c20_210 = arith.constant 20 : index
    %c0_211 = arith.constant 0 : index
    %c0_212 = arith.constant 0 : index
    %c0_213 = arith.constant 0 : index
    %503 = vector.load %arg4[%c0_209, %c20_210, %c0_211, %c0_212, %c0_213] : memref<1x31x1x8x128xf32, #tpu.memory_space<vmem>>, vector<1x3x1x8x128xf32>
    %504 = vector.shape_cast %503 : vector<1x3x1x8x128xf32> to vector<3x8x128xf32>
    %505 = vector.shape_cast %502 : vector<3x8x128xf32> to vector<1x3x1x8x128xf32>
    tpu.vector_store %arg4[%c0_209, %c20_210, %c0_211, %c0_212, %c0_213], %505 {strides = array<i32>} : memref<1x31x1x8x128xf32, #tpu.memory_space<vmem>>, vector<1x3x1x8x128xf32>,
    %c0_214 = arith.constant 0 : index
    %c14 = arith.constant 14 : index
    %c0_215 = arith.constant 0 : index
    %c0_216 = arith.constant 0 : index
    %c0_217 = arith.constant 0 : index
    %506 = vector.load %arg3[%c0_214, %c14, %c0_215, %c0_216, %c0_217] : memref<1x22x1x8x128xf32, #tpu.memory_space<vmem>>, vector<1x1x1x8x128xf32>
    %507 = vector.shape_cast %506 : vector<1x1x1x8x128xf32> to vector<1x8x128xf32>
    %cst_218 = arith.constant 1.000000e+00 : f32
    %508 = vector.broadcast %cst_218 : f32 to vector<1x8x128xf32>
    %509 = arith.mulf %507, %508 : vector<1x8x128xf32>
    %c0_219 = arith.constant 0 : index
    %c23_220 = arith.constant 23 : index
    %c0_221 = arith.constant 0 : index
    %c0_222 = arith.constant 0 : index
    %c0_223 = arith.constant 0 : index
    %510 = vector.load %arg4[%c0_219, %c23_220, %c0_221, %c0_222, %c0_223] : memref<1x31x1x8x128xf32, #tpu.memory_space<vmem>>, vector<1x1x1x8x128xf32>
    %511 = vector.shape_cast %510 : vector<1x1x1x8x128xf32> to vector<1x8x128xf32>
    %512 = vector.shape_cast %509 : vector<1x8x128xf32> to vector<1x1x1x8x128xf32>
    tpu.vector_store %arg4[%c0_219, %c23_220, %c0_221, %c0_222, %c0_223], %512 {strides = array<i32>} : memref<1x31x1x8x128xf32, #tpu.memory_space<vmem>>, vector<1x1x1x8x128xf32>,
    %c0_224 = arith.constant 0 : index
    %c15_225 = arith.constant 15 : index
    %c0_226 = arith.constant 0 : index
    %c0_227 = arith.constant 0 : index
    %c0_228 = arith.constant 0 : index
    %513 = vector.load %arg3[%c0_224, %c15_225, %c0_226, %c0_227, %c0_228] : memref<1x22x1x8x128xf32, #tpu.memory_space<vmem>>, vector<1x3x1x8x128xf32>
    %514 = vector.shape_cast %513 : vector<1x3x1x8x128xf32> to vector<3x8x128xf32>
    %cst_229 = arith.constant 2.500000e-02 : f32
    %515 = vector.broadcast %cst_229 : f32 to vector<3x8x128xf32>
    %516 = arith.mulf %514, %515 : vector<3x8x128xf32>
    %c0_230 = arith.constant 0 : index
    %c24_231 = arith.constant 24 : index
    %c0_232 = arith.constant 0 : index
    %c0_233 = arith.constant 0 : index
    %c0_234 = arith.constant 0 : index
    %517 = vector.load %arg4[%c0_230, %c24_231, %c0_232, %c0_233, %c0_234] : memref<1x31x1x8x128xf32, #tpu.memory_space<vmem>>, vector<1x3x1x8x128xf32>
    %518 = vector.shape_cast %517 : vector<1x3x1x8x128xf32> to vector<3x8x128xf32>
    %519 = vector.shape_cast %516 : vector<3x8x128xf32> to vector<1x3x1x8x128xf32>
    tpu.vector_store %arg4[%c0_230, %c24_231, %c0_232, %c0_233, %c0_234], %519 {strides = array<i32>} : memref<1x31x1x8x128xf32, #tpu.memory_space<vmem>>, vector<1x3x1x8x128xf32>,
    %c0_235 = arith.constant 0 : index
    %c18_236 = arith.constant 18 : index
    %c0_237 = arith.constant 0 : index
    %c0_238 = arith.constant 0 : index
    %c0_239 = arith.constant 0 : index
    %520 = vector.load %arg3[%c0_235, %c18_236, %c0_237, %c0_238, %c0_239] : memref<1x22x1x8x128xf32, #tpu.memory_space<vmem>>, vector<1x1x1x8x128xf32>
    %521 = vector.shape_cast %520 : vector<1x1x1x8x128xf32> to vector<1x8x128xf32>
    %cst_240 = arith.constant 1.000000e+00 : f32
    %522 = vector.broadcast %cst_240 : f32 to vector<1x8x128xf32>
    %523 = arith.mulf %521, %522 : vector<1x8x128xf32>
    %c0_241 = arith.constant 0 : index
    %c27 = arith.constant 27 : index
    %c0_242 = arith.constant 0 : index
    %c0_243 = arith.constant 0 : index
    %c0_244 = arith.constant 0 : index
    %524 = vector.load %arg4[%c0_241, %c27, %c0_242, %c0_243, %c0_244] : memref<1x31x1x8x128xf32, #tpu.memory_space<vmem>>, vector<1x1x1x8x128xf32>
    %525 = vector.shape_cast %524 : vector<1x1x1x8x128xf32> to vector<1x8x128xf32>
    %526 = vector.shape_cast %523 : vector<1x8x128xf32> to vector<1x1x1x8x128xf32>
    tpu.vector_store %arg4[%c0_241, %c27, %c0_242, %c0_243, %c0_244], %526 {strides = array<i32>} : memref<1x31x1x8x128xf32, #tpu.memory_space<vmem>>, vector<1x1x1x8x128xf32>,
    %c0_245 = arith.constant 0 : index
    %c19_246 = arith.constant 19 : index
    %c0_247 = arith.constant 0 : index
    %c0_248 = arith.constant 0 : index
    %c0_249 = arith.constant 0 : index
    %527 = vector.load %arg3[%c0_245, %c19_246, %c0_247, %c0_248, %c0_249] : memref<1x22x1x8x128xf32, #tpu.memory_space<vmem>>, vector<1x3x1x8x128xf32>
    %528 = vector.shape_cast %527 : vector<1x3x1x8x128xf32> to vector<3x8x128xf32>
    %cst_250 = arith.constant 2.500000e-02 : f32
    %529 = vector.broadcast %cst_250 : f32 to vector<3x8x128xf32>
    %530 = arith.mulf %528, %529 : vector<3x8x128xf32>
    %c0_251 = arith.constant 0 : index
    %c28 = arith.constant 28 : index
    %c0_252 = arith.constant 0 : index
    %c0_253 = arith.constant 0 : index
    %c0_254 = arith.constant 0 : index
    %531 = vector.load %arg4[%c0_251, %c28, %c0_252, %c0_253, %c0_254] : memref<1x31x1x8x128xf32, #tpu.memory_space<vmem>>, vector<1x3x1x8x128xf32>
    %532 = vector.shape_cast %531 : vector<1x3x1x8x128xf32> to vector<3x8x128xf32>
    %533 = vector.shape_cast %530 : vector<3x8x128xf32> to vector<1x3x1x8x128xf32>
    tpu.vector_store %arg4[%c0_251, %c28, %c0_252, %c0_253, %c0_254], %533 {strides = array<i32>} : memref<1x31x1x8x128xf32, #tpu.memory_space<vmem>>, vector<1x3x1x8x128xf32>,
    return
  }
  func.func @transform_0(%arg0: i32, %arg1: i32) -> (i32, i32, i32) {
    %c0_i32 = arith.constant 0 : i32
    %c0_i32_0 = arith.constant 0 : i32
    %c0_i32_1 = arith.constant 0 : i32
    return %arg0, %c0_i32, %c0_i32_0 : i32, i32, i32
  }
  func.func @transform_1(%arg0: i32, %arg1: i32) -> (i32, i32, i32, i32, i32) {
    %c0_i32 = arith.constant 0 : i32
    %c0_i32_0 = arith.constant 0 : i32
    %c0_i32_1 = arith.constant 0 : i32
    %c0_i32_2 = arith.constant 0 : i32
    return %arg0, %c0_i32, %arg1, %c0_i32_0, %c0_i32_1 : i32, i32, i32, i32, i32
  }
  func.func @transform_2(%arg0: i32, %arg1: i32) -> (i32, i32, i32, i32, i32) {
    %c0_i32 = arith.constant 0 : i32
    %c0_i32_0 = arith.constant 0 : i32
    %c0_i32_1 = arith.constant 0 : i32
    %c0_i32_2 = arith.constant 0 : i32
    return %arg0, %c0_i32, %arg1, %c0_i32_0, %c0_i32_1 : i32, i32, i32, i32, i32
  }
}

</mosaic_0001>

<llo_original>
// kernel: tpu_custom_call.1
$region0: #{tpu_custom_call.1}
  #allocation0 [shape = 'u32[]', space=smem, size = 0x4, offset = 0x4, fixed_abs, tag = 'smem constant byte address 0x4 - core index']
  #allocation1 [shape = 'u32[144,128]{1,0:T(1,128)}', space=vmem, size = 0x12000, scoped, tag = 'internal scratch']
  %s0 = inlined_call_operand.hbm [shape: f32[4,1,25], index: 0, kind: input, shape index: {}]
  %s1 = inlined_call_operand.hbm [shape: f32[4,22,1,8,128], index: 1, kind: input, shape index: {}]
  %s2 = inlined_call_operand.hbm [shape: f32[4,31,1,8,128], index: 2, kind: output, shape index: {}]
  %s3 = sld [smem:[#allocation0]]
  $region49: #{tpu_custom_call.1} parent=0
    _
  %s5 = ssub.s32 1, %s3
  %s6 = scalar_select 0, %s5, %s3
  $region1: #{tpu_custom_call.1} parent=0
    #allocation2 [shape = 'u8[1024]{0}', space=vmem, size = 0x400, scoped, tag = 'input window, operand 0']
    #allocation3 [shape = 's32[2]{0}', space=sflag, size = 0x8, scoped, tag = 'scoped memory for tpu_custom_call.1']
    #allocation4 [shape = 's32[2]{0}', space=sflag, size = 0x8, scoped, tag = 'scoped memory for tpu_custom_call.1']
    #allocation5 [shape = 'u8[180224]{0}', space=vmem, size = 0x2c000, scoped, tag = 'input window, operand 1']
    #allocation6 [shape = 's32[2]{0}', space=sflag, size = 0x8, scoped, tag = 'scoped memory for tpu_custom_call.1']
    #allocation7 [shape = 'u8[253952]{0}', space=vmem, size = 0x3e000, scoped, tag = 'output window, operand 0']
    %7 = vsyncpa [#allocation3], 0
    %s8 = scalar_lea.sflag [#allocation3], 1
    %9 = vsyncpa %s8, 0
    %10 = vsyncpa [#allocation6], 0
    %s11 = scalar_lea.sflag [#allocation6], 1
    %12 = vsyncpa %s11, 0
    %13 = vsyncpa [#allocation4], 0
    %s14 = scalar_lea.sflag [#allocation4], 1
    %15 = vsyncpa %s14, 0
    loop: start=0, step=1, limit=6
    $region2: #{tpu_custom_call.1} parent=1 // loop_pre_header
      _
    $region3: #{tpu_custom_call.1} parent=1 // loop_header
      %s17 = sphi 0, %s21
      %p18 = scmp.ge.s32.totalorder %s17, 6
      %s24 = sphi 0, %s36
      %s25 = sphi 0, %s32
      %s26 = sphi 0, %s24
      %s27 = sphi 0, %s25
      %s28 = sphi 0, %s26
      %s29 = sphi 0, %s27
      %s39 = sphi 0, %s41
      %s42 = sphi 0, %s39
      %s43 = sphi 0, %s42
      %s59 = sphi 0, %s43
      %s67 = sphi 0, %s69
      %s70 = sphi 0, %s67
      %s71 = sphi 0, %s70
      %s87 = sphi 0, %s71
      %s95 = sphi 0, %s97
      %s98 = sphi 0, %s95
      %s99 = sphi 0, %s98
      %s115 = sphi 0, %s99
    $region4: #{tpu_custom_call.1} parent=1 // loop_header_branch
      %20 = sbr.rel (%p18) target = $region8
    $region5: #{tpu_custom_call.1} parent=1 // loop_body
      %s22 = ssub.s32 %s17, 1
      %s23 = ssub.s32 %s17, 2
      %s30 = sadd.s32 1, %s25
      %p31 = scmp.ge.s32.totalorder %s30, 1
      %s32 = scalar_select %p31, 0, %s30
      %s33 = sadd.s32 1, %s24
      %s34 = scalar_select %p31, %s33, %s24
      %p35 = scmp.ge.s32.totalorder %s34, 4
      %s36 = scalar_select %p35, 0, %s34
      %s37 = ssub.s32 %s24, %s36
      %p38 = scmp.eq.s32.totalorder %s37, 0
      %s40 = sadd.s32 %s39, 1
      %s41 = scalar_select %p38, %s39, %s40
      %p44 = pneg %p38
      %p45 = scmp.eq.s32.totalorder %s17, 3
      %p46 = por %p44, %p45
      %p47 = scmp.ne.s32.totalorder %s39, %s42
      %p48 = scmp.eq.s32.totalorder %s17, 0
      %p49 = por %p47, %p48
      %p50 = scmp.ne.s32.totalorder %s39, %s42
      %p51 = scmp.eq.s32.totalorder %s22, 3
      %p52 = por %p50, %p51
      %p53 = scmp.ne.s32.totalorder %s42, %s43
      %p54 = scmp.eq.s32.totalorder %s22, 0
      %p55 = por %p53, %p54
      %p56 = scmp.ne.s32.totalorder %s42, %s43
      %p57 = scmp.eq.s32.totalorder %s23, 3
      %p58 = por %p56, %p57
      %p60 = scmp.ne.s32.totalorder %s43, %s59
      %p61 = scmp.eq.s32.totalorder %s23, 0
      %p62 = por %p60, %p61
      %s63 = ssub.s32 %s24, %s36
      %s64 = ssub.s32 %s25, %s32
      %s65 = sor.u32 %s63, %s64
      %p66 = scmp.eq.s32.totalorder %s65, 0
      %s68 = sadd.s32 %s67, 1
      %s69 = scalar_select %p66, %s67, %s68
      %p72 = pneg %p66
      %p73 = scmp.eq.s32.totalorder %s17, 3
      %p74 = por %p72, %p73
      %p75 = scmp.ne.s32.totalorder %s67, %s70
      %p76 = scmp.eq.s32.totalorder %s17, 0
      %p77 = por %p75, %p76
      %p78 = scmp.ne.s32.totalorder %s67, %s70
      %p79 = scmp.eq.s32.totalorder %s22, 3
      %p80 = por %p78, %p79
      %p81 = scmp.ne.s32.totalorder %s70, %s71
      %p82 = scmp.eq.s32.totalorder %s22, 0
      %p83 = por %p81, %p82
      %p84 = scmp.ne.s32.totalorder %s70, %s71
      %p85 = scmp.eq.s32.totalorder %s23, 3
      %p86 = por %p84, %p85
      %p88 = scmp.ne.s32.totalorder %s71, %s87
      %p89 = scmp.eq.s32.totalorder %s23, 0
      %p90 = por %p88, %p89
      %s91 = ssub.s32 %s24, %s36
      %s92 = ssub.s32 %s25, %s32
      %s93 = sor.u32 %s91, %s92
      %p94 = scmp.eq.s32.totalorder %s93, 0
      %s96 = sadd.s32 %s95, 1
      %s97 = scalar_select %p94, %s95, %s96
      %p100 = pneg %p94
      %p101 = scmp.eq.s32.totalorder %s17, 3
      %p102 = por %p100, %p101
      %p103 = scmp.ne.s32.totalorder %s95, %s98
      %p104 = scmp.eq.s32.totalorder %s17, 0
      %p105 = por %p103, %p104
      %p106 = scmp.ne.s32.totalorder %s95, %s98
      %p107 = scmp.eq.s32.totalorder %s22, 3
      %p108 = por %p106, %p107
      %p109 = scmp.ne.s32.totalorder %s98, %s99
      %p110 = scmp.eq.s32.totalorder %s22, 0
      %p111 = por %p109, %p110
      %p112 = scmp.ne.s32.totalorder %s98, %s99
      %p113 = scmp.eq.s32.totalorder %s23, 3
      %p114 = por %p112, %p113
      %p116 = scmp.ne.s32.totalorder %s99, %s115
      %p117 = scmp.eq.s32.totalorder %s23, 0
      %p118 = por %p116, %p117
      %p119 = scmp.le.s32.totalorder 1, %s17
      %p120 = scmp.lt.s32.totalorder %s17, 5
      %p121 = pnand %p119, %p120
      %p122 = pneg %p121
      // Predicated region
      $region9: #{tpu_custom_call.1} parent=5 // pred_check
        _
      $region10: #{tpu_custom_call.1} parent=5 // pred_check_branch
        %124 = sbr.rel (%p121) target = $region12
      $region11: #{tpu_custom_call.1} parent=5 // pred_region
        %s125 = ssub.s32 %s17, 1
      $region12: #{tpu_custom_call.1} parent=5 // pred_fallthru
        _
      %p126 = scmp.lt.s32.totalorder %s17, 4
      // Predicated region
      $region13: #{tpu_custom_call.1} parent=5 // pred_check
        %p127 = pneg %p126
      $region14: #{tpu_custom_call.1} parent=5 // pred_check_branch
        %129 = sbr.rel (%p127) target = $region16
      $region15: #{tpu_custom_call.1} parent=5 // pred_region
        // Predicated region
        $region17: #{tpu_custom_call.1} parent=15 // pred_check
          %p130 = pneg %p49
        $region18: #{tpu_custom_call.1} parent=15 // pred_check_branch
          %132 = sbr.rel (%p130) target = $region20
        $region19: #{tpu_custom_call.1} parent=15 // pred_region
          %s133 = sand.u32 %s39, 1
          %s134 = scalar_lea.sflag [#allocation3], %s133
          %s135 = sand.u32 %s39, 1
          %s136 = scalar_lea.vmem [#allocation2], %s135
          %s138 = ssub.s32 16, 16
          %139 = vsyncadd %s134, %s138
          %s140 = smul.addr %s24, 16
          %s141 = scalar_lea.hbm %s0, %s140
          %s143 = sshll.u32 %s136, 4
          %s144 = int_to_ptr.vmem [resolvable:$true] %s143
          %146 = dma.hbm_to_vmem [thread:$0]  %s141, 16, %s144, %s134
        $region20: #{tpu_custom_call.1} parent=15 // pred_fallthru
          _
        // Predicated region
        $region21: #{tpu_custom_call.1} parent=15 // pred_check
          %p147 = pneg %p77
        $region22: #{tpu_custom_call.1} parent=15 // pred_check_branch
          %149 = sbr.rel (%p147) target = $region24
        $region23: #{tpu_custom_call.1} parent=15 // pred_region
          %s150 = sand.u32 %s67, 1
          %s151 = scalar_lea.sflag [#allocation6], %s150
          %s152 = sand.u32 %s67, 1
          %s153 = smul.addr %s152, 176
          %s154 = scalar_lea.vmem [#allocation5], %s153
          %s156 = ssub.s32 2816, 2816
          %157 = vsyncadd %s151, %s156
          %s158 = smul.addr %s24, 22
          %s159 = sadd.s32 %s25, %s158
          %s160 = smul.addr %s159, 128
          %s161 = scalar_lea.hbm %s1, %s160
          %s162 = sshll.u32 %s154, 4
          %s163 = int_to_ptr.vmem [resolvable:$true] %s162
          %168 = dma.hbm_to_vmem [thread:$0]  %s161, 2816, %s163, %s151, 128, 128, 8
        $region24: #{tpu_custom_call.1} parent=15 // pred_fallthru
          _
      $region16: #{tpu_custom_call.1} parent=5 // pred_fallthru
        _
      %p169 = scmp.le.s32.totalorder 1, %s17
      %p170 = scmp.lt.s32.totalorder %s17, 5
      %p171 = pnand %p169, %p170
      %p172 = pneg %p171
      // Predicated region
      $region25: #{tpu_custom_call.1} parent=5 // pred_check
        _
      $region26: #{tpu_custom_call.1} parent=5 // pred_check_branch
        %174 = sbr.rel (%p171) target = $region28
      $region27: #{tpu_custom_call.1} parent=5 // pred_region
        %s175 = ssub.s32 %s17, 1
        %s176 = sand.u32 %s42, 1
        %s177 = scalar_lea.sflag [#allocation3], %s176
        %s178 = sand.u32 %s42, 1
        %s179 = scalar_lea.vmem [#allocation2], %s178
        // Predicated region
        $region29: #{tpu_custom_call.1} parent=27 // pred_check
          %p180 = pneg %p55
        $region30: #{tpu_custom_call.1} parent=27 // pred_check_branch
          %182 = sbr.rel (%p180) target = $region32
        $region31: #{tpu_custom_call.1} parent=27 // pred_region
          %183 = dma.done %s177, 16
        $region32: #{tpu_custom_call.1} parent=27 // pred_fallthru
          _
        %s184 = sand.u32 %s70, 1
        %s185 = scalar_lea.sflag [#allocation6], %s184
        %s186 = sand.u32 %s70, 1
        %s187 = smul.addr %s186, 176
        %s188 = scalar_lea.vmem [#allocation5], %s187
        // Predicated region
        $region33: #{tpu_custom_call.1} parent=27 // pred_check
          %p189 = pneg %p83
        $region34: #{tpu_custom_call.1} parent=27 // pred_check_branch
          %191 = sbr.rel (%p189) target = $region36
        $region35: #{tpu_custom_call.1} parent=27 // pred_region
          %192 = dma.done %s185, 2816
        $region36: #{tpu_custom_call.1} parent=27 // pred_fallthru
          _
        %s193 = sand.u32 %s42, 1
        %s194 = scalar_lea.sflag [#allocation3], %s193
        %s195 = sand.u32 %s42, 1
        %s196 = scalar_lea.vmem [#allocation2], %s195
        %p197 = pneg %p55
        %p198 = pneg %p52
        %s199 = sand.u32 %s70, 1
        %s200 = scalar_lea.sflag [#allocation6], %s199
        %s201 = sand.u32 %s70, 1
        %s202 = smul.addr %s201, 176
        %s203 = scalar_lea.vmem [#allocation5], %s202
        %p204 = pneg %p83
        %p205 = pneg %p80
        %p206 = pneg %p111
        %p207 = pneg %p108
        %s208 = sand.u32 %s98, 1
        %s209 = scalar_lea.sflag [#allocation4], %s208
        %s210 = sand.u32 %s98, 1
        %s211 = smul.addr %s210, 248
        %s212 = scalar_lea.vmem [#allocation7], %s211
        %v213 = vld [vmem:[%s188] sm:$0xff]
        %s214 = scalar_lea.vmem %s188, 8 [#allocation5]
        %v215 = vld [vmem:[%s214] sm:$0xff]
        %s216 = scalar_lea.vmem %s188, 16 [#allocation5]
        %v217 = vld [vmem:[%s216] sm:$0xff]
        %s218 = scalar_lea.vmem %s188, 24 [#allocation5]
        %v219 = vld [vmem:[%s218] sm:$0xff]
        %v220 = vld [vmem:[%s218 + $0x8] sm:$0xff]
        %v221 = vld [vmem:[%s218 + $0x10] sm:$0xff]
        %v222 = vxor.u32 %v219, 2147483648
        %v223 = vxor.u32 %v220, 2147483648
        %v224 = vxor.u32 %v221, 2147483648
        %v225 = vmul.f32 %v222, 1.442695
        %v226 = vpow.pop %v225
        %v227 = vmul.f32 %v223, 1.442695
        %v228 = vpow.pop %v227
        %v229 = vmul.f32 %v224, 1.442695
        %v230 = vpow.pop %v229
        %v231 = vadd.f32 %v226, 1.0
        %v232 = vadd.f32 %v228, 1.0
        %v233 = vadd.f32 %v230, 1.0
        %v234 = vrcp.pop %v231
        %v235 = vmul.f32 1.0, %v234
        %v236 = vrcp.pop %v232
        %v237 = vmul.f32 1.0, %v236
        %v238 = vrcp.pop %v233
        %v239 = vmul.f32 1.0, %v238
        %v240 = vmul.f32 %v235, 14.5
        %v241 = vmul.f32 %v237, 14.5
        %v242 = vmul.f32 %v239, 14.5
        %v243 = vadd.f32 %v240, 0.5
        %v244 = vadd.f32 %v241, 0.5
        %v245 = vadd.f32 %v242, 0.5
        %v246 = vld [vmem:[%s179] sm:$0x1]
        %248 = vrot.lane.b32.xlu0 %v246, 112
        %v249 = vpop.permute.xlu0 %248
        %s251 = vtos %v249
        %252 = vrot.lane.b32.xlu0 %v246, 111
        %v253 = vpop.permute.xlu0 %252
        %s255 = vtos %v253
        %256 = vrot.lane.b32.xlu0 %v246, 109
        %v257 = vpop.permute.xlu0 %256
        %s259 = vtos %v257
        %260 = vrot.lane.b32.xlu0 %v246, 108
        %v261 = vpop.permute.xlu0 %260
        %s263 = vtos %v261
        %s264 = smul.f32 %s263, 0.03125
        %s265 = smul.f32 %s255, 0.03125
        %s266 = ssub.f32 %s264, %s265
        %s267 = smul.f32 %s259, 0.03125
        %s268 = ssub.f32 %s266, %s267
        %s269 = smul.f32 %s251, 0.03125
        %s270 = sadd.f32 %s268, %s269
        %s271 = smul.f32 %s270, 0.1
        %s272 = smul.f32 %s251, %s263
        %s273 = smul.f32 %s255, %s259
        %s274 = ssub.f32 %s272, %s273
        %v275 = vstv %s274
        %v276 = vrcp.pop %v275
        %s277 = vtos %v276
        %s278 = smul.f32 %s271, %s277
        %v279 = vstv %s278
        %v280 = vmul.f32 %v217, %v279
        %v281 = vmul.f32 %v243, %v280
        %v282 = vmul.f32 %v244, %v280
        %v283 = vmul.f32 %v245, %v280
        %s284 = scalar_lea.vmem %s212, 96 [#allocation7]
        %285 = vst [vmem:[%s284] sm:$0xff] %v281
        %286 = vst [vmem:[%s284 + $0x8] sm:$0xff] %v282
        %287 = vst [vmem:[%s284 + $0x10] sm:$0xff] %v283
        %s288 = scalar_lea.vmem %s188, 48 [#allocation5]
        %v289 = vld [vmem:[%s288] sm:$0xff]
        %s290 = scalar_lea.vmem %s188, 56 [#allocation5]
        %v291 = vld [vmem:[%s290] sm:$0xff]
        %s292 = scalar_lea.vmem %s188, 64 [#allocation5]
        %v293 = vld [vmem:[%s292] sm:$0xff]
        %s294 = scalar_lea.vmem %s188, 72 [#allocation5]
        %v295 = vld [vmem:[%s294] sm:$0xff]
        %v296 = vmul.f32 %v289, %v289
        %v297 = vmul.f32 %v291, %v291
        %v298 = vadd.f32 %v296, %v297
        %v299 = vmul.f32 %v293, %v293
        %v300 = vadd.f32 %v298, %v299
        %v301 = vmul.f32 %v295, %v295
        %v302 = vadd.f32 %v300, %v301
        %v303 = vrsqrt.pop %v302
        %v304 = vmul.f32 %v302, %v303
        %vm305 = vcmp.eq.f32.partialorder %v302, inf
        %v306 = vsel %vm305, %v302, %v304
        %vm307 = vcmp.eq.f32.partialorder %v302, 0.0
        %v308 = vand.u32 %v302, 2147483648
        %v309 = vsel %vm307, %v308, %v306
        %v310 = vadd.f32 %v309, 1e-08
        %v311 = vrcp.pop %v310
        %v312 = vmul.f32 1.0, %v311
        %v313 = vmul.f32 %v289, %v312
        %v314 = vmul.f32 %v291, %v312
        %v315 = vmul.f32 %v293, %v312
        %v316 = vmul.f32 %v295, %v312
        %s317 = scalar_lea.vmem %s212, 120 [#allocation7]
        %318 = vst [vmem:[%s317] sm:$0xff] %v313
        %s319 = scalar_lea.vmem %s212, 128 [#allocation7]
        %320 = vst [vmem:[%s319] sm:$0xff] %v314
        %s321 = scalar_lea.vmem %s212, 136 [#allocation7]
        %322 = vst [vmem:[%s321] sm:$0xff] %v315
        %s323 = scalar_lea.vmem %s212, 144 [#allocation7]
        %324 = vst [vmem:[%s323] sm:$0xff] %v316
        %v325 = vmul.f32 %v313, %v313
        %v326 = vmul.f32 %v314, %v314
        %v327 = vadd.f32 %v325, %v326
        %v328 = vmul.f32 %v315, %v315
        %v329 = vadd.f32 %v327, %v328
        %v330 = vmul.f32 %v316, %v316
        %v331 = vadd.f32 %v329, %v330
        %v332 = vadd.f32 %v331, 1e-08
        %v333 = vrcp.pop %v332
        %v334 = vmul.f32 2.0, %v333
        %v335 = vadd.f32 %v326, %v328
        %v336 = vmul.f32 %v334, %v335
        %v337 = vsub.f32 1.0, %v336
        %v338 = vmul.f32 %v313, %v314
        %v339 = vmul.f32 %v315, %v316
        %v340 = vsub.f32 %v338, %v339
        %v341 = vmul.f32 %v334, %v340
        %v342 = vmul.f32 %v313, %v315
        %v343 = vmul.f32 %v314, %v316
        %v344 = vadd.f32 %v342, %v343
        %v345 = vmul.f32 %v334, %v344
        %v346 = vadd.f32 %v338, %v339
        %v347 = vmul.f32 %v334, %v346
        %v348 = vadd.f32 %v325, %v328
        %v349 = vmul.f32 %v334, %v348
        %v350 = vsub.f32 1.0, %v349
        %v351 = vmul.f32 %v314, %v315
        %v352 = vmul.f32 %v313, %v316
        %v353 = vsub.f32 %v351, %v352
        %v354 = vmul.f32 %v334, %v353
        %v355 = vsub.f32 %v342, %v343
        %v356 = vmul.f32 %v334, %v355
        %v357 = vadd.f32 %v351, %v352
        %v358 = vmul.f32 %v334, %v357
        %v359 = vmul.f32 %v334, %v327
        %v360 = vsub.f32 1.0, %v359
        %v361 = vmul.f32 %v281, %v281
        %v362 = vmul.f32 %v282, %v282
        %v363 = vmul.f32 %v283, %v283
        %v364 = vmul.f32 %v337, %v361
        %v365 = vmul.f32 %v341, %v362
        %v366 = vmul.f32 %v345, %v363
        %v367 = vmul.f32 %v347, %v361
        %v368 = vmul.f32 %v350, %v362
        %v369 = vmul.f32 %v354, %v363
        %v370 = vmul.f32 %v356, %v361
        %v371 = vmul.f32 %v358, %v362
        %v372 = vmul.f32 %v360, %v363
        %v373 = vmul.f32 %v364, %v337
        %v374 = vmul.f32 %v365, %v341
        %v375 = vadd.f32 %v373, %v374
        %v376 = vmul.f32 %v366, %v345
        %v377 = vadd.f32 %v375, %v376
        %v378 = vmul.f32 %v364, %v347
        %v379 = vmul.f32 %v365, %v350
        %v380 = vadd.f32 %v378, %v379
        %v381 = vmul.f32 %v366, %v354
        %v382 = vadd.f32 %v380, %v381
        %v383 = vmul.f32 %v364, %v356
        %v384 = vmul.f32 %v365, %v358
        %v385 = vadd.f32 %v383, %v384
        %v386 = vmul.f32 %v366, %v360
        %v387 = vadd.f32 %v385, %v386
        %v388 = vmul.f32 %v367, %v347
        %v389 = vmul.f32 %v368, %v350
        %v390 = vadd.f32 %v388, %v389
        %v391 = vmul.f32 %v369, %v354
        %v392 = vadd.f32 %v390, %v391
        %v393 = vmul.f32 %v367, %v356
        %v394 = vmul.f32 %v368, %v358
        %v395 = vadd.f32 %v393, %v394
        %v396 = vmul.f32 %v369, %v360
        %v397 = vadd.f32 %v395, %v396
        %v398 = vmul.f32 %v370, %v356
        %v399 = vmul.f32 %v371, %v358
        %v400 = vadd.f32 %v398, %v399
        %v401 = vmul.f32 %v372, %v360
        %v402 = vadd.f32 %v400, %v401
        %v403 = vld [vmem:[%s179] sm:$0x1]
        %s404 = vtos %v403
        %406 = vrot.lane.b32.xlu0 %v403, 127
        %v407 = vpop.permute.xlu0 %406
        %s409 = vtos %v407
        %410 = vrot.lane.b32.xlu0 %v403, 126
        %v411 = vpop.permute.xlu0 %410
        %s413 = vtos %v411
        %414 = vrot.lane.b32.xlu0 %v403, 124
        %v415 = vpop.permute.xlu0 %414
        %s417 = vtos %v415
        %418 = vrot.lane.b32.xlu0 %v403, 123
        %v419 = vpop.permute.xlu0 %418
        %s421 = vtos %v419
        %422 = vrot.lane.b32.xlu0 %v403, 122
        %v423 = vpop.permute.xlu0 %422
        %s425 = vtos %v423
        %426 = vrot.lane.b32.xlu0 %v403, 120
        %v427 = vpop.permute.xlu0 %426
        %s429 = vtos %v427
        %430 = vrot.lane.b32.xlu0 %v403, 119
        %v431 = vpop.permute.xlu0 %430
        %s433 = vtos %v431
        %434 = vrot.lane.b32.xlu0 %v403, 118
        %v435 = vpop.permute.xlu0 %434
        %s437 = vtos %v435
        %v438 = vstv %s404
        %v439 = vmul.f32 %v377, %v438
        %v440 = vstv %s409
        %v441 = vmul.f32 %v382, %v440
        %v442 = vadd.f32 %v439, %v441
        %v443 = vstv %s413
        %v444 = vmul.f32 %v387, %v443
        %v445 = vadd.f32 %v442, %v444
        %v446 = vmul.f32 %v382, %v438
        %v447 = vmul.f32 %v392, %v440
        %v448 = vadd.f32 %v446, %v447
        %v449 = vmul.f32 %v397, %v443
        %v450 = vadd.f32 %v448, %v449
        %v451 = vmul.f32 %v387, %v438
        %v452 = vmul.f32 %v397, %v440
        %v453 = vadd.f32 %v451, %v452
        %v454 = vmul.f32 %v402, %v443
        %v455 = vadd.f32 %v453, %v454
        %v456 = vstv %s417
        %v457 = vmul.f32 %v377, %v456
        %v458 = vstv %s421
        %v459 = vmul.f32 %v382, %v458
        %v460 = vadd.f32 %v457, %v459
        %v461 = vstv %s425
        %v462 = vmul.f32 %v387, %v461
        %v463 = vadd.f32 %v460, %v462
        %v464 = vmul.f32 %v382, %v456
        %v465 = vmul.f32 %v392, %v458
        %v466 = vadd.f32 %v464, %v465
        %v467 = vmul.f32 %v397, %v461
        %v468 = vadd.f32 %v466, %v467
        %v469 = vmul.f32 %v387, %v456
        %v470 = vmul.f32 %v397, %v458
        %v471 = vadd.f32 %v469, %v470
        %v472 = vmul.f32 %v402, %v461
        %v473 = vadd.f32 %v471, %v472
        %v474 = vstv %s429
        %v475 = vmul.f32 %v377, %v474
        %v476 = vstv %s433
        %v477 = vmul.f32 %v382, %v476
        %v478 = vadd.f32 %v475, %v477
        %v479 = vstv %s437
        %v480 = vmul.f32 %v387, %v479
        %v481 = vadd.f32 %v478, %v480
        %v482 = vmul.f32 %v382, %v474
        %v483 = vmul.f32 %v392, %v476
        %v484 = vadd.f32 %v482, %v483
        %v485 = vmul.f32 %v397, %v479
        %v486 = vadd.f32 %v484, %v485
        %v487 = vmul.f32 %v387, %v474
        %v488 = vmul.f32 %v397, %v476
        %v489 = vadd.f32 %v487, %v488
        %v490 = vmul.f32 %v402, %v479
        %v491 = vadd.f32 %v489, %v490
        %v492 = vmul.f32 %v438, %v445
        %v493 = vmul.f32 %v440, %v450
        %v494 = vadd.f32 %v492, %v493
        %v495 = vmul.f32 %v443, %v455
        %v496 = vadd.f32 %v494, %v495
        %v497 = vmul.f32 %v438, %v463
        %v498 = vmul.f32 %v440, %v468
        %v499 = vadd.f32 %v497, %v498
        %v500 = vmul.f32 %v443, %v473
        %v501 = vadd.f32 %v499, %v500
        %v502 = vmul.f32 %v438, %v481
        %v503 = vmul.f32 %v440, %v486
        %v504 = vadd.f32 %v502, %v503
        %v505 = vmul.f32 %v443, %v491
        %v506 = vadd.f32 %v504, %v505
        %v507 = vmul.f32 %v456, %v463
        %v508 = vmul.f32 %v458, %v468
        %v509 = vadd.f32 %v507, %v508
        %v510 = vmul.f32 %v461, %v473
        %v511 = vadd.f32 %v509, %v510
        %v512 = vmul.f32 %v456, %v481
        %v513 = vmul.f32 %v458, %v486
        %v514 = vadd.f32 %v512, %v513
        %v515 = vmul.f32 %v461, %v491
        %v516 = vadd.f32 %v514, %v515
        %v517 = vmul.f32 %v474, %v481
        %v518 = vmul.f32 %v476, %v486
        %v519 = vadd.f32 %v517, %v518
        %v520 = vmul.f32 %v479, %v491
        %v521 = vadd.f32 %v519, %v520
        %s522 = scalar_lea.vmem %s212, 24 [#allocation7]
        %523 = vst [vmem:[%s522] sm:$0xff] %v496
        %s524 = scalar_lea.vmem %s212, 32 [#allocation7]
        %525 = vst [vmem:[%s524] sm:$0xff] %v501
        %s526 = scalar_lea.vmem %s212, 40 [#allocation7]
        %527 = vst [vmem:[%s526] sm:$0xff] %v506
        %s528 = scalar_lea.vmem %s212, 48 [#allocation7]
        %529 = vst [vmem:[%s528] sm:$0xff] %v501
        %s530 = scalar_lea.vmem %s212, 56 [#allocation7]
        %531 = vst [vmem:[%s530] sm:$0xff] %v511
        %s532 = scalar_lea.vmem %s212, 64 [#allocation7]
        %533 = vst [vmem:[%s532] sm:$0xff] %v516
        %s534 = scalar_lea.vmem %s212, 72 [#allocation7]
        %535 = vst [vmem:[%s534] sm:$0xff] %v506
        %s536 = scalar_lea.vmem %s212, 80 [#allocation7]
        %537 = vst [vmem:[%s536] sm:$0xff] %v516
        %s538 = scalar_lea.vmem %s212, 88 [#allocation7]
        %539 = vst [vmem:[%s538] sm:$0xff] %v521
        %v540 = vld [vmem:[%s179] sm:$0x1]
        %542 = vrot.lane.b32.xlu0 %v540, 112
        %v543 = vpop.permute.xlu0 %542
        %s545 = vtos %v543
        %546 = vrot.lane.b32.xlu0 %v540, 111
        %v547 = vpop.permute.xlu0 %546
        %s549 = vtos %v547
        %550 = vrot.lane.b32.xlu0 %v540, 110
        %v551 = vpop.permute.xlu0 %550
        %s553 = vtos %v551
        %554 = vrot.lane.b32.xlu0 %v540, 109
        %v555 = vpop.permute.xlu0 %554
        %s557 = vtos %v555
        %558 = vrot.lane.b32.xlu0 %v540, 108
        %v559 = vpop.permute.xlu0 %558
        %s561 = vtos %v559
        %562 = vrot.lane.b32.xlu0 %v540, 107
        %v563 = vpop.permute.xlu0 %562
        %s565 = vtos %v563
        %566 = vrot.lane.b32.xlu0 %v540, 106
        %v567 = vpop.permute.xlu0 %566
        %s569 = vtos %v567
        %570 = vrot.lane.b32.xlu0 %v540, 105
        %v571 = vpop.permute.xlu0 %570
        %s573 = vtos %v571
        %574 = vrot.lane.b32.xlu0 %v540, 104
        %v575 = vpop.permute.xlu0 %574
        %s577 = vtos %v575
        %s578 = smul.f32 %s561, %s577
        %s579 = smul.f32 %s565, %s573
        %s580 = ssub.f32 %s578, %s579
        %s581 = smul.f32 %s545, %s580
        %s582 = smul.f32 %s557, %s577
        %s583 = smul.f32 %s565, %s569
        %s584 = ssub.f32 %s582, %s583
        %s585 = smul.f32 %s549, %s584
        %s586 = ssub.f32 %s581, %s585
        %s587 = smul.f32 %s557, %s573
        %s588 = smul.f32 %s561, %s569
        %s589 = ssub.f32 %s587, %s588
        %s590 = smul.f32 %s553, %s589
        %s591 = sadd.f32 %s586, %s590
        %v592 = vstv %s591
        %v593 = vrcp.pop %v592
        %s594 = vtos %v593
        %s595 = smul.f32 %s580, %s594
        %s596 = smul.f32 %s553, %s573
        %s597 = smul.f32 %s549, %s577
        %s598 = ssub.f32 %s596, %s597
        %s599 = smul.f32 %s598, %s594
        %s600 = smul.f32 %s549, %s565
        %s601 = smul.f32 %s553, %s561
        %s602 = ssub.f32 %s600, %s601
        %s603 = smul.f32 %s602, %s594
        %s604 = ssub.f32 %s583, %s582
        %s605 = smul.f32 %s604, %s594
        %s606 = smul.f32 %s545, %s577
        %s607 = smul.f32 %s553, %s569
        %s608 = ssub.f32 %s606, %s607
        %s609 = smul.f32 %s608, %s594
        %s610 = smul.f32 %s553, %s557
        %s611 = smul.f32 %s545, %s565
        %s612 = ssub.f32 %s610, %s611
        %s613 = smul.f32 %s612, %s594
        %s614 = smul.f32 %s589, %s594
        %s615 = smul.f32 %s549, %s569
        %s616 = smul.f32 %s545, %s573
        %s617 = ssub.f32 %s615, %s616
        %s618 = smul.f32 %s617, %s594
        %s619 = smul.f32 %s545, %s561
        %s620 = smul.f32 %s549, %s557
        %s621 = ssub.f32 %s619, %s620
        %s622 = smul.f32 %s621, %s594
        %v623 = vstv %s595
        %v624 = vmul.f32 %v623, %v213
        %v625 = vstv %s599
        %v626 = vmul.f32 %v625, %v215
        %v627 = vadd.f32 %v624, %v626
        %v628 = vstv %s603
        %v629 = vadd.f32 %v627, %v628
        %v630 = vstv %s605
        %v631 = vmul.f32 %v630, %v213
        %v632 = vstv %s609
        %v633 = vmul.f32 %v632, %v215
        %v634 = vadd.f32 %v631, %v633
        %v635 = vstv %s613
        %v636 = vadd.f32 %v634, %v635
        %v637 = vstv %s614
        %v638 = vmul.f32 %v637, %v213
        %v639 = vstv %s618
        %v640 = vmul.f32 %v639, %v215
        %v641 = vadd.f32 %v638, %v640
        %v642 = vstv %s622
        %v643 = vadd.f32 %v641, %v642
        %v644 = vmul.f32 %v629, %v629
        %v645 = vmul.f32 %v636, %v636
        %v646 = vadd.f32 %v644, %v645
        %v647 = vmul.f32 %v643, %v643
        %v648 = vadd.f32 %v646, %v647
        %v649 = vrsqrt.pop %v648
        %v650 = vmul.f32 %v629, %v649
        %v651 = vmul.f32 %v636, %v649
        %v652 = vmul.f32 %v643, %v649
        %v653 = vmul.f32 %v438, %v650
        %v654 = vmul.f32 %v440, %v651
        %v655 = vadd.f32 %v653, %v654
        %v656 = vmul.f32 %v443, %v652
        %v657 = vadd.f32 %v655, %v656
        %v658 = vmul.f32 %v456, %v650
        %v659 = vmul.f32 %v458, %v651
        %v660 = vadd.f32 %v658, %v659
        %v661 = vmul.f32 %v461, %v652
        %v662 = vadd.f32 %v660, %v661
        %v663 = vmul.f32 %v474, %v650
        %v664 = vmul.f32 %v476, %v651
        %v665 = vadd.f32 %v663, %v664
        %v666 = vmul.f32 %v479, %v652
        %v667 = vadd.f32 %v665, %v666
        %668 = vrot.lane.b32.xlu0 %v540, 125
        %v669 = vpop.permute.xlu0 %668
        %s671 = vtos %v669
        %v672 = vmul.f32 %v657, %v217
        %v673 = vstv %s671
        %v674 = vadd.f32 %v673, %v672
        %675 = vst [vmem:[%s212] sm:$0xff] %v674
        %v676 = vld [vmem:[%s179] sm:$0x1]
        %678 = vrot.lane.b32.xlu0 %v676, 121
        %v679 = vpop.permute.xlu0 %678
        %s681 = vtos %v679
        %v682 = vmul.f32 %v662, %v217
        %v683 = vstv %s681
        %v684 = vadd.f32 %v683, %v682
        %s685 = scalar_lea.vmem %s212, 8 [#allocation7]
        %686 = vst [vmem:[%s685] sm:$0xff] %v684
        %v687 = vld [vmem:[%s179] sm:$0x1]
        %689 = vrot.lane.b32.xlu0 %v687, 117
        %v690 = vpop.permute.xlu0 %689
        %s692 = vtos %v690
        %v693 = vmul.f32 %v667, %v217
        %v694 = vstv %s692
        %v695 = vadd.f32 %v694, %v693
        %s696 = scalar_lea.vmem %s212, 16 [#allocation7]
        %697 = vst [vmem:[%s696] sm:$0xff] %v695
        %s698 = scalar_lea.vmem %s188, 80 [#allocation5]
        %v699 = vld [vmem:[%s698] sm:$0xff]
        %s700 = scalar_lea.vmem %s212, 152 [#allocation7]
        %701 = vst [vmem:[%s700] sm:$0xff] %v699
        %s702 = scalar_lea.vmem %s188, 88 [#allocation5]
        %v703 = vld [vmem:[%s702] sm:$0xff]
        %v704 = vld [vmem:[%s702 + $0x8] sm:$0xff]
        %v705 = vld [vmem:[%s702 + $0x10] sm:$0xff]
        %v706 = vmul.f32 %v703, 0.025
        %v707 = vmul.f32 %v704, 0.025
        %v708 = vmul.f32 %v705, 0.025
        %s709 = scalar_lea.vmem %s212, 160 [#allocation7]
        %710 = vst [vmem:[%s709] sm:$0xff] %v706
        %711 = vst [vmem:[%s709 + $0x8] sm:$0xff] %v707
        %712 = vst [vmem:[%s709 + $0x10] sm:$0xff] %v708
        %s713 = scalar_lea.vmem %s188, 112 [#allocation5]
        %v714 = vld [vmem:[%s713] sm:$0xff]
        %s715 = scalar_lea.vmem %s212, 184 [#allocation7]
        %716 = vst [vmem:[%s715] sm:$0xff] %v714
        %s717 = scalar_lea.vmem %s188, 120 [#allocation5]
        %v718 = vld [vmem:[%s717] sm:$0xff]
        %v719 = vld [vmem:[%s717 + $0x8] sm:$0xff]
        %v720 = vld [vmem:[%s717 + $0x10] sm:$0xff]
        %v721 = vmul.f32 %v718, 0.025
        %v722 = vmul.f32 %v719, 0.025
        %v723 = vmul.f32 %v720, 0.025
        %s724 = scalar_lea.vmem %s212, 192 [#allocation7]
        %725 = vst [vmem:[%s724] sm:$0xff] %v721
        %726 = vst [vmem:[%s724 + $0x8] sm:$0xff] %v722
        %727 = vst [vmem:[%s724 + $0x10] sm:$0xff] %v723
        %s728 = scalar_lea.vmem %s188, 144 [#allocation5]
        %v729 = vld [vmem:[%s728] sm:$0xff]
        %s730 = scalar_lea.vmem %s212, 216 [#allocation7]
        %731 = vst [vmem:[%s730] sm:$0xff] %v729
        %s732 = scalar_lea.vmem %s188, 152 [#allocation5]
        %v733 = vld [vmem:[%s732] sm:$0xff]
        %v734 = vld [vmem:[%s732 + $0x8] sm:$0xff]
        %v735 = vld [vmem:[%s732 + $0x10] sm:$0xff]
        %v736 = vmul.f32 %v733, 0.025
        %v737 = vmul.f32 %v734, 0.025
        %v738 = vmul.f32 %v735, 0.025
        %s739 = scalar_lea.vmem %s212, 224 [#allocation7]
        %740 = vst [vmem:[%s739] sm:$0xff] %v736
        %741 = vst [vmem:[%s739 + $0x8] sm:$0xff] %v737
        %742 = vst [vmem:[%s739 + $0x10] sm:$0xff] %v738
        %s743 = sand.u32 %s98, 1
        %s744 = scalar_lea.sflag [#allocation4], %s743
        %s745 = sand.u32 %s98, 1
        %s746 = smul.addr %s745, 248
        %s747 = scalar_lea.vmem [#allocation7], %s746
        // Predicated region
        $region37: #{tpu_custom_call.1} parent=27 // pred_check
          %p748 = pneg %p108
        $region38: #{tpu_custom_call.1} parent=27 // pred_check_branch
          %750 = sbr.rel (%p748) target = $region40
        $region39: #{tpu_custom_call.1} parent=27 // pred_region
          %s752 = ssub.s32 3968, 3968
          %753 = vsyncadd %s744, %s752
          %s754 = smul.addr %s26, 31
          %s755 = sadd.s32 %s27, %s754
          %s756 = smul.addr %s755, 128
          %s757 = scalar_lea.hbm %s2, %s756
          %s758 = sshll.u32 %s747, 4
          %s759 = int_to_ptr.vmem [resolvable:$true] %s758
          %764 = dma.vmem_to_hbm [thread:$0]  %s759, 3968, %s757, %s744, 128, 128, 8
        $region40: #{tpu_custom_call.1} parent=27 // pred_fallthru
          _
      $region28: #{tpu_custom_call.1} parent=5 // pred_fallthru
        _
      %p765 = scmp.le.s32.totalorder 2, %s17
      // Predicated region
      $region41: #{tpu_custom_call.1} parent=5 // pred_check
        %p766 = pneg %p765
      $region42: #{tpu_custom_call.1} parent=5 // pred_check_branch
        %768 = sbr.rel (%p766) target = $region44
      $region43: #{tpu_custom_call.1} parent=5 // pred_region
        %s769 = ssub.s32 %s17, 2
        // Predicated region
        $region45: #{tpu_custom_call.1} parent=43 // pred_check
          %p770 = pneg %p114
        $region46: #{tpu_custom_call.1} parent=43 // pred_check_branch
          %772 = sbr.rel (%p770) target = $region48
        $region47: #{tpu_custom_call.1} parent=43 // pred_region
          %s773 = sand.u32 %s99, 1
          %s774 = scalar_lea.sflag [#allocation4], %s773
          %s775 = sand.u32 %s99, 1
          %s776 = smul.addr %s775, 248
          %s777 = scalar_lea.vmem [#allocation7], %s776
          %778 = dma.done %s774, 3968
        $region48: #{tpu_custom_call.1} parent=43 // pred_fallthru
          _
      $region44: #{tpu_custom_call.1} parent=5 // pred_fallthru
        _
    $region6: #{tpu_custom_call.1} parent=1 // loop_footer
      %s21 = sadd.s32 1, %s17
    $region7: #{tpu_custom_call.1} parent=1 // loop_footer_branch
      %16 = sbr.rel target = $region3
    $region8: #{tpu_custom_call.1} parent=1 // loop_exit
      _
    %779 = vsyncpa [#allocation3], 1
    %s780 = scalar_lea.sflag [#allocation3], 1
    %781 = vsyncpa %s780, 1
    %782 = vsyncpa [#allocation6], 1
    %s783 = scalar_lea.sflag [#allocation6], 1
    %784 = vsyncpa %s783, 1
    %785 = vsyncpa [#allocation4], 1
    %s786 = scalar_lea.sflag [#allocation4], 1
    %787 = vsyncpa %s786, 1

</llo_original>
